<compile_context>
chip_gen: v7x
topology: tpu7x:2x2x1
jax: 0.10.0
libtpu: 0.0.40
codegen_flags: <defaults>
</compile_context>

<pallas_src>
import jax
import jax.numpy as jnp
from jax import lax
from jax.experimental import pallas as pl
from jax.experimental.pallas import tpu as pltpu


def _round_up(x, m):
    return ((x + m - 1) // m) * m


def fusion_kernel(gru_ref, cnn_ref, lgb_ref,
                  w1a_ref, w1b_ref, w1c_ref, b1_ref,
                  w2t_ref, b2_ref, out_ref):
    # gru: (TB,64) cnn: (TB,32) lgb: (TB,6)
    # w1a: (64,64) w1b: (32,64) w1c: (6,64) b1: (1,64)
    # w2t: (6,64)  b2: (6,1)    out: (6,TB)   <- lane-dense (batch on lanes)
    h = jnp.dot(gru_ref[...], w1a_ref[...], preferred_element_type=jnp.float32)
    h = h + jnp.dot(cnn_ref[...], w1b_ref[...], preferred_element_type=jnp.float32)
    h = h + jnp.dot(lgb_ref[...], w1c_ref[...], preferred_element_type=jnp.float32)
    h = jnp.maximum(h + b1_ref[...], 0.0)          # (TB, 64), f32 epilogue
    # Second layer transposed: (C, TB) = w2^T @ h^T.  NT dot_general
    # (contract dim 1 of both operands) -- same dimension numbers as q.k^T in
    # flash attention, no materialized transpose of h.
    y_t = lax.dot_general(w2t_ref[...], h,
                          dimension_numbers=(((1,), (1,)), ((), ())),
                          preferred_element_type=jnp.float32)
    out_ref[...] = (y_t + b2_ref[...]).astype(out_ref.dtype)


def fusion_forward(gru_out, cnn_out, lgb_out, w1, b1, w2, b2, *,
                   tb=2048, min_pallas_batch=512):
    B = gru_out.shape[0]
    dg, dc, dl = gru_out.shape[1], cnn_out.shape[1], lgb_out.shape[1]
    D = dg + dc + dl
    H = w1.shape[1]
    C = w2.shape[1]
    assert w1.shape[0] == D and w2.shape[0] == H
    assert cnn_out.shape[0] == B and lgb_out.shape[0] == B

    # Fold the concat into fc1's weight (one-time ~26 KiB slice):
    #   concat([g,c,l]) @ W1 == g @ W1[:dg] + c @ W1[dg:dg+dc] + l @ W1[dg+dc:]
    w1a, w1b, w1c = w1[:dg], w1[dg:dg + dc], w1[dg + dc:]
    b1r = jnp.reshape(b1, (1, H))
    w2t = jnp.transpose(w2)            # (C, H), tiny one-time transpose
    b2c = jnp.reshape(b2, (C, 1))      # column bias for the (C, TB) layout

    # Small-batch fallback: below ~512 rows one grid step is pure overhead and
    # plain XLA fusion wins (keeps the B=4 inference case fast).
    if B < min_pallas_batch:
        h = jnp.maximum(gru_out @ w1a + cnn_out @ w1b + lgb_out @ w1c + b1r, 0.0)
        return h @ w2 + jnp.reshape(b2, (1, C))

    # Batch tile: even tile count >= 2 (both v7x TCs get work under
    # "parallel"), each tile a multiple of 128 rows (lane-aligned transposed
    # output block), capped at `tb`.
    num_tiles = 2 * max(1, pl.cdiv(B, 2 * tb))
    TB = _round_up(pl.cdiv(B, num_tiles), 128)
    grid = (pl.cdiv(B, TB),)

    # VMEM budget: 3 input streams x 2 buffers x TB*128lanes*4B dominates
    # (every (TB, d) f32 block pads to 128 lanes); output + weights are small.
    vmem_bytes = 3 * 2 * TB * 128 * 4 + (4 << 20)
    vmem_limit = int(min(max(vmem_bytes, 16 << 20), 40 << 20))

    cost = pl.CostEstimate(
        flops=2 * B * (D * H + H * C),
        transcendentals=0,
        bytes_accessed=4 * (B * (D + C) + D * H + H + H * C + C),
    )

    out_t = pl.pallas_call(
        fusion_kernel,
        out_shape=jax.ShapeDtypeStruct((C, B), gru_out.dtype),
        grid=grid,
        in_specs=[
            # Activations: tiled along batch; feature dim is the full extent.
            pl.BlockSpec((TB, dg), lambda i: (i, 0)),
            pl.BlockSpec((TB, dc), lambda i: (i, 0)),
            pl.BlockSpec((TB, dl), lambda i: (i, 0)),
            # Weights / biases: constant block index -> resident in VMEM.
            pl.BlockSpec((dg, H), lambda i: (0, 0)),
            pl.BlockSpec((dc, H), lambda i: (0, 0)),
            pl.BlockSpec((dl, H), lambda i: (0, 0)),
            pl.BlockSpec((1, H), lambda i: (0, 0)),
            pl.BlockSpec((C, H), lambda i: (0, 0)),
            pl.BlockSpec((C, 1), lambda i: (0, 0)),
        ],
        # (C, TB) output: batch on the lane axis -> unmasked, lane-dense stores.
        out_specs=pl.BlockSpec((C, TB), lambda i: (0, i)),
        compiler_params=pltpu.CompilerParams(
            dimension_semantics=("parallel",),   # shards tiles over v7x's 2 TCs
            vmem_limit_bytes=vmem_limit,
        ),
        cost_estimate=cost,
    )(gru_out, cnn_out, lgb_out, w1a, w1b, w1c, b1r, w2t, b2c)

    # Keep the module's (B, num_classes) contract; this (6, B) transpose is a
    # tiny pass XLA typically fuses into the consumer.
    # TODO(synk): if the consumer can take (num_classes, B) directly, return
    # out_t and skip this transpose entirely.
    return out_t.T


def init_params(key, input_dim=102, hidden=64, num_classes=6):
    # Deterministic synthetic init (mimics nn.Linear's uniform fan-in init).
    k1, k2, k3, k4 = jax.random.split(key, 4)
    lim1 = 1.0 / jnp.sqrt(input_dim)
    lim2 = 1.0 / jnp.sqrt(hidden)
    w1 = jax.random.uniform(k1, (input_dim, hidden), jnp.float32, -lim1, lim1)
    b1 = jax.random.uniform(k2, (1, hidden), jnp.float32, -lim1, lim1)
    w2 = jax.random.uniform(k3, (hidden, num_classes), jnp.float32, -lim2, lim2)
    b2 = jax.random.uniform(k4, (1, num_classes), jnp.float32, -lim2, lim2)
    return w1, b1, w2, b2


if __name__ == "__main__":
    key = jax.random.PRNGKey(0)
    kp, kg, kc, kl = jax.random.split(key, 4)

    # Feature split consistent with input_dim=102 after concat along dim=1.
    gru_dim, cnn_dim, lgb_dim = 64, 32, 6   # 64 + 32 + 6 = 102
    w1, b1, w2, b2 = init_params(kp, input_dim=102, hidden=64, num_classes=6)

    def reference(g, c, l):
        x = jnp.concatenate([g, c, l], axis=1)
        return jnp.maximum(x @ w1 + b1, 0.0) @ w2 + b2

    # 1) Pallas path: batch big enough for the tiled kernel -> 2 tiles, the
    #    second one partial (exercises lane-axis masking of the (C, B) output).
    B = 1000
    gru_out = jax.random.normal(kg, (B, gru_dim), jnp.float32)
    cnn_out = jax.random.normal(kc, (B, cnn_dim), jnp.float32)
    lgb_out = jax.random.normal(kl, (B, lgb_dim), jnp.float32)

    out = fusion_forward(gru_out, cnn_out, lgb_out, w1, b1, w2, b2)
    jax.block_until_ready(out)
    assert out.shape == (B, 6)
    assert jnp.allclose(out, reference(gru_out, cnn_out, lgb_out),
                        atol=1e-5, rtol=1e-5)

    # 2) Small-batch fallback path (B=4): plain-XLA, same math.
    out_small = fusion_forward(gru_out[:4], cnn_out[:4], lgb_out[:4],
                               w1, b1, w2, b2)
    jax.block_until_ready(out_small)
    assert out_small.shape == (4, 6)
    assert jnp.allclose(out_small,
                        reference(gru_out[:4], cnn_out[:4], lgb_out[:4]),
                        atol=1e-5, rtol=1e-5)

    print("KERNEL_OK")
</pallas_src>

<mosaic_0001>
module attributes {stable_mosaic.version = 11 : i64} {
  func.func @fusion_kernel(%arg0: i32, %arg1: memref<512x64xf32, #tpu.memory_space<vmem>>, %arg2: memref<512x32xf32, #tpu.memory_space<vmem>>, %arg3: memref<512x6xf32, #tpu.memory_space<vmem>>, %arg4: memref<64x64xf32, #tpu.memory_space<vmem>>, %arg5: memref<32x64xf32, #tpu.memory_space<vmem>>, %arg6: memref<6x64xf32, #tpu.memory_space<vmem>>, %arg7: memref<1x64xf32, #tpu.memory_space<vmem>>, %arg8: memref<6x64xf32, #tpu.memory_space<vmem>>, %arg9: memref<6x1xf32, #tpu.memory_space<vmem>>, %arg10: memref<6x512xf32, #tpu.memory_space<vmem>>) attributes {dimension_semantics = [#tpu.dimension_semantics<parallel>], iteration_bounds = array<i64: 2>, scalar_prefetch = 0 : i64, scratch_operands = 0 : i64, tpu.core_type = #tpu.core_type<tc>, window_params = [{transform_indices = @transform_0, window_bounds = array<i64: 512, 64>}, {transform_indices = @transform_1, window_bounds = array<i64: 512, 32>}, {transform_indices = @transform_2, window_bounds = array<i64: 512, 6>}, {pipeline_mode = #tpu.pipeline_mode<synchronous>, transform_indices = @transform_3, window_bounds = array<i64: 64, 64>}, {pipeline_mode = #tpu.pipeline_mode<synchronous>, transform_indices = @transform_4, window_bounds = array<i64: 32, 64>}, {pipeline_mode = #tpu.pipeline_mode<synchronous>, transform_indices = @transform_5, window_bounds = array<i64: 6, 64>}, {pipeline_mode = #tpu.pipeline_mode<synchronous>, transform_indices = @transform_6, window_bounds = array<i64: 1, 64>}, {pipeline_mode = #tpu.pipeline_mode<synchronous>, transform_indices = @transform_7, window_bounds = array<i64: 6, 64>}, {pipeline_mode = #tpu.pipeline_mode<synchronous>, transform_indices = @transform_8, window_bounds = array<i64: 6, 1>}, {transform_indices = @transform_9, window_bounds = array<i64: 6, 512>}]} {
    %c0 = arith.constant 0 : index
    %c0_0 = arith.constant 0 : index
    %0 = vector.load %arg1[%c0, %c0_0] : memref<512x64xf32, #tpu.memory_space<vmem>>, vector<512x64xf32>
    %c0_1 = arith.constant 0 : index
    %c0_2 = arith.constant 0 : index
    %1 = vector.load %arg4[%c0_1, %c0_2] : memref<64x64xf32, #tpu.memory_space<vmem>>, vector<64x64xf32>
    %cst = arith.constant dense<0.000000e+00> : vector<512x64xf32>
    %2 = tpu.matmul %0, %1, %cst {dimension_numbers = #tpu.dot_dimension_numbers<[1], [0], [0], [1], [0, 0, 1, 1], [], []>} : vector<512x64xf32>, vector<64x64xf32>, vector<512x64xf32> -> vector<512x64xf32>
    %c0_3 = arith.constant 0 : index
    %c0_4 = arith.constant 0 : index
    %3 = vector.load %arg2[%c0_3, %c0_4] : memref<512x32xf32, #tpu.memory_space<vmem>>, vector<512x32xf32>
    %c0_5 = arith.constant 0 : index
    %c0_6 = arith.constant 0 : index
    %4 = vector.load %arg5[%c0_5, %c0_6] : memref<32x64xf32, #tpu.memory_space<vmem>>, vector<32x64xf32>
    %cst_7 = arith.constant dense<0.000000e+00> : vector<512x64xf32>
    %5 = tpu.matmul %3, %4, %cst_7 {dimension_numbers = #tpu.dot_dimension_numbers<[1], [0], [0], [1], [0, 0, 1, 1], [], []>} : vector<512x32xf32>, vector<32x64xf32>, vector<512x64xf32> -> vector<512x64xf32>
    %6 = arith.addf %2, %5 : vector<512x64xf32>
    %c0_8 = arith.constant 0 : index
    %c0_9 = arith.constant 0 : index
    %7 = vector.load %arg3[%c0_8, %c0_9] : memref<512x6xf32, #tpu.memory_space<vmem>>, vector<512x6xf32>
    %c0_10 = arith.constant 0 : index
    %c0_11 = arith.constant 0 : index
    %8 = vector.load %arg6[%c0_10, %c0_11] : memref<6x64xf32, #tpu.memory_space<vmem>>, vector<6x64xf32>
    %cst_12 = arith.constant dense<0.000000e+00> : vector<512x64xf32>
    %9 = tpu.matmul %7, %8, %cst_12 {dimension_numbers = #tpu.dot_dimension_numbers<[1], [0], [0], [1], [0, 0, 1, 1], [], []>} : vector<512x6xf32>, vector<6x64xf32>, vector<512x64xf32> -> vector<512x64xf32>
    %10 = arith.addf %6, %9 : vector<512x64xf32>
    %c0_13 = arith.constant 0 : index
    %c0_14 = arith.constant 0 : index
    %11 = vector.load %arg7[%c0_13, %c0_14] : memref<1x64xf32, #tpu.memory_space<vmem>>, vector<1x64xf32>
    %12 = vector.broadcast %11 : vector<1x64xf32> to vector<512x64xf32>
    %13 = arith.addf %10, %12 : vector<512x64xf32>
    %cst_15 = arith.constant 0.000000e+00 : f32
    %14 = vector.broadcast %cst_15 : f32 to vector<512x64xf32>
    %15 = arith.maximumf %13, %14 : vector<512x64xf32>
    %c0_16 = arith.constant 0 : index
    %c0_17 = arith.constant 0 : index
    %16 = vector.load %arg8[%c0_16, %c0_17] : memref<6x64xf32, #tpu.memory_space<vmem>>, vector<6x64xf32>
    %cst_18 = arith.constant dense<0.000000e+00> : vector<6x512xf32>
    %17 = tpu.matmul %16, %15, %cst_18 {dimension_numbers = #tpu.dot_dimension_numbers<[1], [1], [0], [0], [0, 0, 1, 0], [], []>} : vector<6x64xf32>, vector<512x64xf32>, vector<6x512xf32> -> vector<6x512xf32>
    %c0_19 = arith.constant 0 : index
    %c0_20 = arith.constant 0 : index
    %18 = vector.load %arg9[%c0_19, %c0_20] : memref<6x1xf32, #tpu.memory_space<vmem>>, vector<6x1xf32>
    %19 = vector.broadcast %18 : vector<6x1xf32> to vector<6x512xf32>
    %20 = arith.addf %17, %19 : vector<6x512xf32>
    %c0_21 = arith.constant 0 : index
    %c0_22 = arith.constant 0 : index
    %21 = vector.load %arg10[%c0_21, %c0_22] : memref<6x512xf32, #tpu.memory_space<vmem>>, vector<6x512xf32>
    tpu.vector_store %arg10[%c0_21, %c0_22], %20 {strides = array<i32>} : memref<6x512xf32, #tpu.memory_space<vmem>>, vector<6x512xf32>,
    return
  }
  func.func @transform_0(%arg0: i32) -> (i32, i32) {
    %c0_i32 = arith.constant 0 : i32
    %c0_i32_0 = arith.constant 0 : i32
    return %arg0, %c0_i32 : i32, i32
  }
  func.func @transform_1(%arg0: i32) -> (i32, i32) {
    %c0_i32 = arith.constant 0 : i32
    %c0_i32_0 = arith.constant 0 : i32
    return %arg0, %c0_i32 : i32, i32
  }
  func.func @transform_2(%arg0: i32) -> (i32, i32) {
    %c0_i32 = arith.constant 0 : i32
    %c0_i32_0 = arith.constant 0 : i32
    return %arg0, %c0_i32 : i32, i32
  }
  func.func @transform_3(%arg0: i32) -> (i32, i32) {
    %c0_i32 = arith.constant 0 : i32
    %c0_i32_0 = arith.constant 0 : i32
    %c0_i32_1 = arith.constant 0 : i32
    return %c0_i32, %c0_i32_0 : i32, i32
  }
  func.func @transform_4(%arg0: i32) -> (i32, i32) {
    %c0_i32 = arith.constant 0 : i32
    %c0_i32_0 = arith.constant 0 : i32
    %c0_i32_1 = arith.constant 0 : i32
    return %c0_i32, %c0_i32_0 : i32, i32
  }
  func.func @transform_5(%arg0: i32) -> (i32, i32) {
    %c0_i32 = arith.constant 0 : i32
    %c0_i32_0 = arith.constant 0 : i32
    %c0_i32_1 = arith.constant 0 : i32
    return %c0_i32, %c0_i32_0 : i32, i32
  }
  func.func @transform_6(%arg0: i32) -> (i32, i32) {
    %c0_i32 = arith.constant 0 : i32
    %c0_i32_0 = arith.constant 0 : i32
    %c0_i32_1 = arith.constant 0 : i32
    return %c0_i32, %c0_i32_0 : i32, i32
  }
  func.func @transform_7(%arg0: i32) -> (i32, i32) {
    %c0_i32 = arith.constant 0 : i32
    %c0_i32_0 = arith.constant 0 : i32
    %c0_i32_1 = arith.constant 0 : i32
    return %c0_i32, %c0_i32_0 : i32, i32
  }
  func.func @transform_8(%arg0: i32) -> (i32, i32) {
    %c0_i32 = arith.constant 0 : i32
    %c0_i32_0 = arith.constant 0 : i32
    %c0_i32_1 = arith.constant 0 : i32
    return %c0_i32, %c0_i32_0 : i32, i32
  }
  func.func @transform_9(%arg0: i32) -> (i32, i32) {
    %c0_i32 = arith.constant 0 : i32
    %c0_i32_0 = arith.constant 0 : i32
    return %c0_i32, %arg0 : i32, i32
  }
}

</mosaic_0001>

<llo_original>
// kernel: tpu_custom_call.1
$region0: #{tpu_custom_call.1}
  #allocation0 [shape = 'u32[]', space=smem, size = 0x4, offset = 0x4, fixed_abs, tag = 'smem constant byte address 0x4 - core index']
  #allocation1 [shape = 'u32[144,128]{1,0:T(1,128)}', space=vmem, size = 0x12000, scoped, tag = 'internal scratch']
  %s0 = inlined_call_operand.vmem [shape: f32[1000,64], index: 0, kind: input, shape index: {}]
  %s1 = inlined_call_operand.vmem [shape: f32[1000,32], index: 1, kind: input, shape index: {}]
  %s2 = inlined_call_operand.vmem [shape: f32[1000,6], index: 2, kind: input, shape index: {}]
  %s3 = inlined_call_operand.vmem [shape: f32[64,64], index: 3, kind: input, shape index: {}]
  %s4 = inlined_call_operand.vmem [shape: f32[32,64], index: 4, kind: input, shape index: {}]
  %s5 = inlined_call_operand.vmem [shape: f32[6,64], index: 5, kind: input, shape index: {}]
  %s6 = inlined_call_operand.vmem [shape: f32[1,64], index: 6, kind: input, shape index: {}]
  %s7 = inlined_call_operand.vmem [shape: f32[6,64], index: 7, kind: input, shape index: {}]
  %s8 = inlined_call_operand.vmem [shape: f32[6,1], index: 8, kind: input, shape index: {}]
  %s9 = inlined_call_operand.hbm [shape: f32[6,1000], index: 9, kind: output, shape index: {}]
  %s10 = sld [smem:[#allocation0]]
  $region69: #{tpu_custom_call.1} parent=0
    _
  %s12 = ssub.s32 1, %s10
  %s13 = scalar_select 0, %s12, %s10
  $region1: #{tpu_custom_call.1} parent=0
    #allocation2 [shape = 'u8[32768]{0}', space=vmem, size = 0x8000, scoped, tag = 'output window, operand 0']
    #allocation3 [shape = 's32[2]{0}', space=sflag, size = 0x8, scoped, tag = 'scoped memory for tpu_custom_call.1']
    %14 = vsyncpa [#allocation3], 0
    %s15 = scalar_lea.sflag [#allocation3], 1
    %16 = vsyncpa %s15, 0
    loop: start=0, step=1, limit=4
    $region2: #{tpu_custom_call.1} parent=1 // loop_pre_header
      _
    $region3: #{tpu_custom_call.1} parent=1 // loop_header
      %s18 = sphi 0, %s22
      %p19 = scmp.ge.s32.totalorder %s18, 4
      %s28 = sphi 0, %s30
      %s31 = sphi 0, %s28
      %s32 = sphi 0, %s31
      %s48 = sphi 0, %s32
      %s54 = sphi 0, %s56
      %s57 = sphi 0, %s54
      %s58 = sphi 0, %s57
      %s74 = sphi 0, %s58
      %s80 = sphi 0, %s82
      %s83 = sphi 0, %s80
      %s84 = sphi 0, %s83
      %s100 = sphi 0, %s84
      %s104 = sphi 0, %s104
      %s106 = sphi 0, %s104
      %s107 = sphi 0, %s106
      %s121 = sphi 0, %s107
      %s125 = sphi 0, %s125
      %s127 = sphi 0, %s125
      %s128 = sphi 0, %s127
      %s142 = sphi 0, %s128
      %s146 = sphi 0, %s146
      %s148 = sphi 0, %s146
      %s149 = sphi 0, %s148
      %s163 = sphi 0, %s149
      %s167 = sphi 0, %s167
      %s169 = sphi 0, %s167
      %s170 = sphi 0, %s169
      %s184 = sphi 0, %s170
      %s188 = sphi 0, %s188
      %s190 = sphi 0, %s188
      %s191 = sphi 0, %s190
      %s205 = sphi 0, %s191
      %s209 = sphi 0, %s209
      %s211 = sphi 0, %s209
      %s212 = sphi 0, %s211
      %s226 = sphi 0, %s212
      %s232 = sphi 0, %s234
      %s235 = sphi 0, %s232
      %s236 = sphi 0, %s235
      %s252 = sphi 0, %s236
    $region4: #{tpu_custom_call.1} parent=1 // loop_header_branch
      %21 = sbr.rel (%p19) target = $region8
    $region5: #{tpu_custom_call.1} parent=1 // loop_body
      %s23 = ssub.s32 %s18, 1
      %s24 = ssub.s32 %s18, 2
      %s25 = sadd.s32 %s18, 1
      %s26 = ssub.s32 %s18, %s25
      %p27 = scmp.eq.s32.totalorder %s26, 0
      %s29 = sadd.s32 %s28, 1
      %s30 = scalar_select %p27, %s28, %s29
      %p33 = pneg %p27
      %p34 = scmp.eq.s32.totalorder %s18, 1
      %p35 = por %p33, %p34
      %p36 = scmp.ne.s32.totalorder %s28, %s31
      %p37 = scmp.eq.s32.totalorder %s18, 0
      %p38 = por %p36, %p37
      %p39 = scmp.ne.s32.totalorder %s28, %s31
      %p40 = scmp.eq.s32.totalorder %s23, 1
      %p41 = por %p39, %p40
      %p42 = scmp.ne.s32.totalorder %s31, %s32
      %p43 = scmp.eq.s32.totalorder %s23, 0
      %p44 = por %p42, %p43
      %p45 = scmp.ne.s32.totalorder %s31, %s32
      %p46 = scmp.eq.s32.totalorder %s24, 1
      %p47 = por %p45, %p46
      %p49 = scmp.ne.s32.totalorder %s32, %s48
      %p50 = scmp.eq.s32.totalorder %s24, 0
      %p51 = por %p49, %p50
      %s52 = ssub.s32 %s18, %s25
      %p53 = scmp.eq.s32.totalorder %s52, 0
      %s55 = sadd.s32 %s54, 1
      %s56 = scalar_select %p53, %s54, %s55
      %p59 = pneg %p53
      %p60 = scmp.eq.s32.totalorder %s18, 1
      %p61 = por %p59, %p60
      %p62 = scmp.ne.s32.totalorder %s54, %s57
      %p63 = scmp.eq.s32.totalorder %s18, 0
      %p64 = por %p62, %p63
      %p65 = scmp.ne.s32.totalorder %s54, %s57
      %p66 = scmp.eq.s32.totalorder %s23, 1
      %p67 = por %p65, %p66
      %p68 = scmp.ne.s32.totalorder %s57, %s58
      %p69 = scmp.eq.s32.totalorder %s23, 0
      %p70 = por %p68, %p69
      %p71 = scmp.ne.s32.totalorder %s57, %s58
      %p72 = scmp.eq.s32.totalorder %s24, 1
      %p73 = por %p71, %p72
      %p75 = scmp.ne.s32.totalorder %s58, %s74
      %p76 = scmp.eq.s32.totalorder %s24, 0
      %p77 = por %p75, %p76
      %s78 = ssub.s32 %s18, %s25
      %p79 = scmp.eq.s32.totalorder %s78, 0
      %s81 = sadd.s32 %s80, 1
      %s82 = scalar_select %p79, %s80, %s81
      %p85 = pneg %p79
      %p86 = scmp.eq.s32.totalorder %s18, 1
      %p87 = por %p85, %p86
      %p88 = scmp.ne.s32.totalorder %s80, %s83
      %p89 = scmp.eq.s32.totalorder %s18, 0
      %p90 = por %p88, %p89
      %p91 = scmp.ne.s32.totalorder %s80, %s83
      %p92 = scmp.eq.s32.totalorder %s23, 1
      %p93 = por %p91, %p92
      %p94 = scmp.ne.s32.totalorder %s83, %s84
      %p95 = scmp.eq.s32.totalorder %s23, 0
      %p96 = por %p94, %p95
      %p97 = scmp.ne.s32.totalorder %s83, %s84
      %p98 = scmp.eq.s32.totalorder %s24, 1
      %p99 = por %p97, %p98
      %p101 = scmp.ne.s32.totalorder %s84, %s100
      %p102 = scmp.eq.s32.totalorder %s24, 0
      %p103 = por %p101, %p102
      %s105 = sadd.s32 %s104, 1
      %p108 = scmp.eq.s32.totalorder %s18, 1
      %p109 = scmp.ne.s32.totalorder %s104, %s106
      %p110 = scmp.eq.s32.totalorder %s18, 0
      %p111 = por %p109, %p110
      %p112 = scmp.ne.s32.totalorder %s104, %s106
      %p113 = scmp.eq.s32.totalorder %s23, 1
      %p114 = por %p112, %p113
      %p115 = scmp.ne.s32.totalorder %s106, %s107
      %p116 = scmp.eq.s32.totalorder %s23, 0
      %p117 = por %p115, %p116
      %p118 = scmp.ne.s32.totalorder %s106, %s107
      %p119 = scmp.eq.s32.totalorder %s24, 1
      %p120 = por %p118, %p119
      %p122 = scmp.ne.s32.totalorder %s107, %s121
      %p123 = scmp.eq.s32.totalorder %s24, 0
      %p124 = por %p122, %p123
      %s126 = sadd.s32 %s125, 1
      %p129 = scmp.eq.s32.totalorder %s18, 1
      %p130 = scmp.ne.s32.totalorder %s125, %s127
      %p131 = scmp.eq.s32.totalorder %s18, 0
      %p132 = por %p130, %p131
      %p133 = scmp.ne.s32.totalorder %s125, %s127
      %p134 = scmp.eq.s32.totalorder %s23, 1
      %p135 = por %p133, %p134
      %p136 = scmp.ne.s32.totalorder %s127, %s128
      %p137 = scmp.eq.s32.totalorder %s23, 0
      %p138 = por %p136, %p137
      %p139 = scmp.ne.s32.totalorder %s127, %s128
      %p140 = scmp.eq.s32.totalorder %s24, 1
      %p141 = por %p139, %p140
      %p143 = scmp.ne.s32.totalorder %s128, %s142
      %p144 = scmp.eq.s32.totalorder %s24, 0
      %p145 = por %p143, %p144
      %s147 = sadd.s32 %s146, 1
      %p150 = scmp.eq.s32.totalorder %s18, 1
      %p151 = scmp.ne.s32.totalorder %s146, %s148
      %p152 = scmp.eq.s32.totalorder %s18, 0
      %p153 = por %p151, %p152
      %p154 = scmp.ne.s32.totalorder %s146, %s148
      %p155 = scmp.eq.s32.totalorder %s23, 1
      %p156 = por %p154, %p155
      %p157 = scmp.ne.s32.totalorder %s148, %s149
      %p158 = scmp.eq.s32.totalorder %s23, 0
      %p159 = por %p157, %p158
      %p160 = scmp.ne.s32.totalorder %s148, %s149
      %p161 = scmp.eq.s32.totalorder %s24, 1
      %p162 = por %p160, %p161
      %p164 = scmp.ne.s32.totalorder %s149, %s163
      %p165 = scmp.eq.s32.totalorder %s24, 0
      %p166 = por %p164, %p165
      %s168 = sadd.s32 %s167, 1
      %p171 = scmp.eq.s32.totalorder %s18, 1
      %p172 = scmp.ne.s32.totalorder %s167, %s169
      %p173 = scmp.eq.s32.totalorder %s18, 0
      %p174 = por %p172, %p173
      %p175 = scmp.ne.s32.totalorder %s167, %s169
      %p176 = scmp.eq.s32.totalorder %s23, 1
      %p177 = por %p175, %p176
      %p178 = scmp.ne.s32.totalorder %s169, %s170
      %p179 = scmp.eq.s32.totalorder %s23, 0
      %p180 = por %p178, %p179
      %p181 = scmp.ne.s32.totalorder %s169, %s170
      %p182 = scmp.eq.s32.totalorder %s24, 1
      %p183 = por %p181, %p182
      %p185 = scmp.ne.s32.totalorder %s170, %s184
      %p186 = scmp.eq.s32.totalorder %s24, 0
      %p187 = por %p185, %p186
      %s189 = sadd.s32 %s188, 1
      %p192 = scmp.eq.s32.totalorder %s18, 1
      %p193 = scmp.ne.s32.totalorder %s188, %s190
      %p194 = scmp.eq.s32.totalorder %s18, 0
      %p195 = por %p193, %p194
      %p196 = scmp.ne.s32.totalorder %s188, %s190
      %p197 = scmp.eq.s32.totalorder %s23, 1
      %p198 = por %p196, %p197
      %p199 = scmp.ne.s32.totalorder %s190, %s191
      %p200 = scmp.eq.s32.totalorder %s23, 0
      %p201 = por %p199, %p200
      %p202 = scmp.ne.s32.totalorder %s190, %s191
      %p203 = scmp.eq.s32.totalorder %s24, 1
      %p204 = por %p202, %p203
      %p206 = scmp.ne.s32.totalorder %s191, %s205
      %p207 = scmp.eq.s32.totalorder %s24, 0
      %p208 = por %p206, %p207
      %s210 = sadd.s32 %s209, 1
      %p213 = scmp.eq.s32.totalorder %s18, 1
      %p214 = scmp.ne.s32.totalorder %s209, %s211
      %p215 = scmp.eq.s32.totalorder %s18, 0
      %p216 = por %p214, %p215
      %p217 = scmp.ne.s32.totalorder %s209, %s211
      %p218 = scmp.eq.s32.totalorder %s23, 1
      %p219 = por %p217, %p218
      %p220 = scmp.ne.s32.totalorder %s211, %s212
      %p221 = scmp.eq.s32.totalorder %s23, 0
      %p222 = por %p220, %p221
      %p223 = scmp.ne.s32.totalorder %s211, %s212
      %p224 = scmp.eq.s32.totalorder %s24, 1
      %p225 = por %p223, %p224
      %p227 = scmp.ne.s32.totalorder %s212, %s226
      %p228 = scmp.eq.s32.totalorder %s24, 0
      %p229 = por %p227, %p228
      %s230 = ssub.s32 %s18, %s25
      %p231 = scmp.eq.s32.totalorder %s230, 0
      %s233 = sadd.s32 %s232, 1
      %s234 = scalar_select %p231, %s232, %s233
      %p237 = pneg %p231
      %p238 = scmp.eq.s32.totalorder %s18, 1
      %p239 = por %p237, %p238
      %p240 = scmp.ne.s32.totalorder %s232, %s235
      %p241 = scmp.eq.s32.totalorder %s18, 0
      %p242 = por %p240, %p241
      %p243 = scmp.ne.s32.totalorder %s232, %s235
      %p244 = scmp.eq.s32.totalorder %s23, 1
      %p245 = por %p243, %p244
      %p246 = scmp.ne.s32.totalorder %s235, %s236
      %p247 = scmp.eq.s32.totalorder %s23, 0
      %p248 = por %p246, %p247
      %p249 = scmp.ne.s32.totalorder %s235, %s236
      %p250 = scmp.eq.s32.totalorder %s24, 1
      %p251 = por %p249, %p250
      %p253 = scmp.ne.s32.totalorder %s236, %s252
      %p254 = scmp.eq.s32.totalorder %s24, 0
      %p255 = por %p253, %p254
      %p256 = scmp.le.s32.totalorder 1, %s18
      %p257 = scmp.lt.s32.totalorder %s18, 3
      %p258 = pnand %p256, %p257
      %p259 = pneg %p258
      // Predicated region
      $region9: #{tpu_custom_call.1} parent=5 // pred_check
        _
      $region10: #{tpu_custom_call.1} parent=5 // pred_check_branch
        %261 = sbr.rel (%p258) target = $region12
      $region11: #{tpu_custom_call.1} parent=5 // pred_region
        %s262 = ssub.s32 %s18, 1
        // Predicated region
        $region13: #{tpu_custom_call.1} parent=11 // pred_check
          %p263 = pneg %p117
        $region14: #{tpu_custom_call.1} parent=11 // pred_check_branch
          %265 = sbr.rel (%p263) target = $region16
        $region15: #{tpu_custom_call.1} parent=11 // pred_region
          _
        $region16: #{tpu_custom_call.1} parent=11 // pred_fallthru
          _
        // Predicated region
        $region17: #{tpu_custom_call.1} parent=11 // pred_check
          %p266 = pneg %p138
        $region18: #{tpu_custom_call.1} parent=11 // pred_check_branch
          %268 = sbr.rel (%p266) target = $region20
        $region19: #{tpu_custom_call.1} parent=11 // pred_region
          _
        $region20: #{tpu_custom_call.1} parent=11 // pred_fallthru
          _
        // Predicated region
        $region21: #{tpu_custom_call.1} parent=11 // pred_check
          %p269 = pneg %p159
        $region22: #{tpu_custom_call.1} parent=11 // pred_check_branch
          %271 = sbr.rel (%p269) target = $region24
        $region23: #{tpu_custom_call.1} parent=11 // pred_region
          _
        $region24: #{tpu_custom_call.1} parent=11 // pred_fallthru
          _
        // Predicated region
        $region25: #{tpu_custom_call.1} parent=11 // pred_check
          %p272 = pneg %p180
        $region26: #{tpu_custom_call.1} parent=11 // pred_check_branch
          %274 = sbr.rel (%p272) target = $region28
        $region27: #{tpu_custom_call.1} parent=11 // pred_region
          _
        $region28: #{tpu_custom_call.1} parent=11 // pred_fallthru
          _
        // Predicated region
        $region29: #{tpu_custom_call.1} parent=11 // pred_check
          %p275 = pneg %p201
        $region30: #{tpu_custom_call.1} parent=11 // pred_check_branch
          %277 = sbr.rel (%p275) target = $region32
        $region31: #{tpu_custom_call.1} parent=11 // pred_region
          _
        $region32: #{tpu_custom_call.1} parent=11 // pred_fallthru
          _
        // Predicated region
        $region33: #{tpu_custom_call.1} parent=11 // pred_check
          %p278 = pneg %p222
        $region34: #{tpu_custom_call.1} parent=11 // pred_check_branch
          %280 = sbr.rel (%p278) target = $region36
        $region35: #{tpu_custom_call.1} parent=11 // pred_region
          _
        $region36: #{tpu_custom_call.1} parent=11 // pred_fallthru
          _
      $region12: #{tpu_custom_call.1} parent=5 // pred_fallthru
        _
      %p281 = scmp.lt.s32.totalorder %s18, 2
      // Predicated region
      $region37: #{tpu_custom_call.1} parent=5 // pred_check
        %p282 = pneg %p281
      $region38: #{tpu_custom_call.1} parent=5 // pred_check_branch
        %284 = sbr.rel (%p282) target = $region40
      $region39: #{tpu_custom_call.1} parent=5 // pred_region
        // Predicated region
        $region41: #{tpu_custom_call.1} parent=39 // pred_check
          %p285 = pneg %p38
        $region42: #{tpu_custom_call.1} parent=39 // pred_check_branch
          %287 = sbr.rel (%p285) target = $region44
        $region43: #{tpu_custom_call.1} parent=39 // pred_region
          %s288 = smul.u32 64, %s18
          %s289 = ssub.s32 125, %s288
          %p290 = scmp.lt.s32.totalorder %s289, 64
          %s291 = scalar_select %p290, %s289, 64
          %s292 = smul.u32 128, %s291
          %p293 = scmp.lt.s32.totalorder %s288, 124
          %s294 = scalar_select %p293, %s288, 124
          %s295 = smul.addr %s294, 8
          %s296 = scalar_lea.vmem %s0, %s295
          %s297 = smul.u32 64, %s18
          %s298 = ssub.s32 125, %s297
          %p299 = scmp.lt.s32.totalorder %s298, 64
          %s300 = scalar_select %p299, %s298, 64
          %s301 = smul.u32 128, %s300
        $region44: #{tpu_custom_call.1} parent=39 // pred_fallthru
          _
        // Predicated region
        $region45: #{tpu_custom_call.1} parent=39 // pred_check
          %p302 = pneg %p64
        $region46: #{tpu_custom_call.1} parent=39 // pred_check_branch
          %304 = sbr.rel (%p302) target = $region48
        $region47: #{tpu_custom_call.1} parent=39 // pred_region
          %s305 = smul.u32 64, %s18
          %s306 = ssub.s32 125, %s305
          %p307 = scmp.lt.s32.totalorder %s306, 64
          %s308 = scalar_select %p307, %s306, 64
          %s309 = smul.u32 128, %s308
          %p310 = scmp.lt.s32.totalorder %s305, 124
          %s311 = scalar_select %p310, %s305, 124
          %s312 = smul.addr %s311, 8
          %s313 = scalar_lea.vmem %s1, %s312
          %s314 = smul.u32 64, %s18
          %s315 = ssub.s32 125, %s314
          %p316 = scmp.lt.s32.totalorder %s315, 64
          %s317 = scalar_select %p316, %s315, 64
          %s318 = smul.u32 128, %s317
        $region48: #{tpu_custom_call.1} parent=39 // pred_fallthru
          _
        // Predicated region
        $region49: #{tpu_custom_call.1} parent=39 // pred_check
          %p319 = pneg %p90
        $region50: #{tpu_custom_call.1} parent=39 // pred_check_branch
          %321 = sbr.rel (%p319) target = $region52
        $region51: #{tpu_custom_call.1} parent=39 // pred_region
          %s322 = smul.u32 64, %s18
          %s323 = ssub.s32 125, %s322
          %p324 = scmp.lt.s32.totalorder %s323, 64
          %s325 = scalar_select %p324, %s323, 64
          %s326 = smul.u32 128, %s325
          %p327 = scmp.lt.s32.totalorder %s322, 124
          %s328 = scalar_select %p327, %s322, 124
          %s329 = smul.addr %s328, 8
          %s330 = scalar_lea.vmem %s2, %s329
          %s331 = smul.u32 64, %s18
          %s332 = ssub.s32 125, %s331
          %p333 = scmp.lt.s32.totalorder %s332, 64
          %s334 = scalar_select %p333, %s332, 64
          %s335 = smul.u32 128, %s334
        $region52: #{tpu_custom_call.1} parent=39 // pred_fallthru
          _
      $region40: #{tpu_custom_call.1} parent=5 // pred_fallthru
        _
      %p336 = scmp.le.s32.totalorder 1, %s18
      %p337 = scmp.lt.s32.totalorder %s18, 3
      %p338 = pnand %p336, %p337
      %p339 = pneg %p338
      // Predicated region
      $region53: #{tpu_custom_call.1} parent=5 // pred_check
        _
      $region54: #{tpu_custom_call.1} parent=5 // pred_check_branch
        %341 = sbr.rel (%p338) target = $region56
      $region55: #{tpu_custom_call.1} parent=5 // pred_region
        %s342 = ssub.s32 %s18, 1
        %s343 = smul.u32 64, %s23
        %s344 = ssub.s32 125, %s343
        %p345 = scmp.lt.s32.totalorder %s344, 64
        %s346 = scalar_select %p345, %s344, 64
        %s347 = smul.u32 128, %s346
        %p348 = scmp.lt.s32.totalorder %s343, 124
        %s349 = scalar_select %p348, %s343, 124
        %s350 = smul.addr %s349, 8
        %s351 = scalar_lea.vmem %s0, %s350
        %p352 = pneg %p44
        %p353 = pneg %p41
        %s354 = smul.u32 64, %s23
        %s355 = ssub.s32 125, %s354
        %p356 = scmp.lt.s32.totalorder %s355, 64
        %s357 = scalar_select %p356, %s355, 64
        %s358 = smul.u32 128, %s357
        %p359 = scmp.lt.s32.totalorder %s354, 124
        %s360 = scalar_select %p359, %s354, 124
        %s361 = smul.addr %s360, 8
        %s362 = scalar_lea.vmem %s1, %s361
        %p363 = pneg %p70
        %p364 = pneg %p67
        %s365 = smul.u32 64, %s23
        %s366 = ssub.s32 125, %s365
        %p367 = scmp.lt.s32.totalorder %s366, 64
        %s368 = scalar_select %p367, %s366, 64
        %s369 = smul.u32 128, %s368
        %p370 = scmp.lt.s32.totalorder %s365, 124
        %s371 = scalar_select %p370, %s365, 124
        %s372 = smul.addr %s371, 8
        %s373 = scalar_lea.vmem %s2, %s372
        %p374 = pneg %p96
        %p375 = pneg %p93
        %p376 = pneg %p117
        %p377 = pneg %p114
        %p378 = pneg %p138
        %p379 = pneg %p135
        %p380 = pneg %p159
        %p381 = pneg %p156
        %p382 = pneg %p180
        %p383 = pneg %p177
        %p384 = pneg %p201
        %p385 = pneg %p198
        %p386 = pneg %p222
        %p387 = pneg %p219
        %p388 = pneg %p248
        %p389 = pneg %p245
        %s390 = sand.u32 %s235, 1
        %s391 = scalar_lea.sflag [#allocation3], %s390
        %s392 = sand.u32 %s235, 1
        %s393 = smul.addr %s392, 32
        %s394 = scalar_lea.vmem [#allocation2], %s393
        %s395 = smul.u32 64, %s23
        %s396 = ssub.s32 125, %s395
        %p397 = scmp.lt.s32.totalorder %s396, 64
        %s398 = scalar_select %p397, %s396, 64
        %s399 = smul.u32 128, %s398
        %p400 = scmp.lt.s32.totalorder %s395, 124
        %s401 = scalar_select %p400, %s395, 124
        %s402 = smul.addr %s401, 8
        %s403 = scalar_lea.vmem %s0, %s402
        %s404 = smul.u32 64, %s23
        %s405 = ssub.s32 125, %s404
        %p406 = scmp.lt.s32.totalorder %s405, 64
        %s407 = scalar_select %p406, %s405, 64
        %s408 = smul.u32 128, %s407
        %s409 = smul.u32 64, %s23
        %s410 = ssub.s32 125, %s409
        %p411 = scmp.lt.s32.totalorder %s410, 64
        %s412 = scalar_select %p411, %s410, 64
        %s413 = smul.u32 128, %s412
        %p414 = scmp.lt.s32.totalorder %s409, 124
        %s415 = scalar_select %p414, %s409, 124
        %s416 = smul.addr %s415, 8
        %s417 = scalar_lea.vmem %s1, %s416
        %s418 = smul.u32 64, %s23
        %s419 = ssub.s32 125, %s418
        %p420 = scmp.lt.s32.totalorder %s419, 64
        %s421 = scalar_select %p420, %s419, 64
        %s422 = smul.u32 128, %s421
        %s423 = smul.u32 64, %s23
        %s424 = ssub.s32 125, %s423
        %p425 = scmp.lt.s32.totalorder %s424, 64
        %s426 = scalar_select %p425, %s424, 64
        %s427 = smul.u32 128, %s426
        %p428 = scmp.lt.s32.totalorder %s423, 124
        %s429 = scalar_select %p428, %s423, 124
        %s430 = smul.addr %s429, 8
        %s431 = scalar_lea.vmem %s2, %s430
        %s432 = smul.u32 64, %s23
        %s433 = ssub.s32 125, %s432
        %p434 = scmp.lt.s32.totalorder %s433, 64
        %s435 = scalar_select %p434, %s433, 64
        %s436 = smul.u32 128, %s435
        %s437 = smul.u32 4, %s23
        %v438 = vld [vmem:[%s403] sm:$0xff]
        %v439 = vld [vmem:[%s403 + $0x8] sm:$0xff]
        %v440 = vld [vmem:[%s403 + $0x10] sm:$0xff]
        %v441 = vld [vmem:[%s403 + $0x18] sm:$0xff]
        %v442 = vld [vmem:[%s403 + $0x20] sm:$0xff]
        %v443 = vld [vmem:[%s403 + $0x28] sm:$0xff]
        %v444 = vld [vmem:[%s403 + $0x30] sm:$0xff]
        %v445 = vld [vmem:[%s403 + $0x38] sm:$0xff]
        %v446 = vld [vmem:[%s403 + $0x40] sm:$0xff]
        %v447 = vld [vmem:[%s403 + $0x48] sm:$0xff]
        %v448 = vld [vmem:[%s403 + $0x50] sm:$0xff]
        %v449 = vld [vmem:[%s403 + $0x58] sm:$0xff]
        %v450 = vld [vmem:[%s403 + $0x60] sm:$0xff]
        %v451 = vld [vmem:[%s403 + $0x68] sm:$0xff]
        %v452 = vld [vmem:[%s403 + $0x70] sm:$0xff]
        %v453 = vld [vmem:[%s403 + $0x78] sm:$0xff]
        %v454 = vld [vmem:[%s403 + $0x80] sm:$0xff]
        %v455 = vld [vmem:[%s403 + $0x88] sm:$0xff]
        %v456 = vld [vmem:[%s403 + $0x90] sm:$0xff]
        %v457 = vld [vmem:[%s403 + $0x98] sm:$0xff]
        %v458 = vld [vmem:[%s403 + $0xa0] sm:$0xff]
        %v459 = vld [vmem:[%s403 + $0xa8] sm:$0xff]
        %v460 = vld [vmem:[%s403 + $0xb0] sm:$0xff]
        %v461 = vld [vmem:[%s403 + $0xb8] sm:$0xff]
        %v462 = vld [vmem:[%s403 + $0xc0] sm:$0xff]
        %v463 = vld [vmem:[%s403 + $0xc8] sm:$0xff]
        %v464 = vld [vmem:[%s403 + $0xd0] sm:$0xff]
        %v465 = vld [vmem:[%s403 + $0xd8] sm:$0xff]
        %v466 = vld [vmem:[%s403 + $0xe0] sm:$0xff]
        %v467 = vld [vmem:[%s403 + $0xe8] sm:$0xff]
        %v468 = vld [vmem:[%s403 + $0xf0] sm:$0xff]
        %v469 = vld [vmem:[%s403 + $0xf8] sm:$0xff]
        %v470 = vld [vmem:[%s403 + $0x100] sm:$0xff]
        %v471 = vld [vmem:[%s403 + $0x108] sm:$0xff]
        %v472 = vld [vmem:[%s403 + $0x110] sm:$0xff]
        %v473 = vld [vmem:[%s403 + $0x118] sm:$0xff]
        %v474 = vld [vmem:[%s403 + $0x120] sm:$0xff]
        %v475 = vld [vmem:[%s403 + $0x128] sm:$0xff]
        %v476 = vld [vmem:[%s403 + $0x130] sm:$0xff]
        %v477 = vld [vmem:[%s403 + $0x138] sm:$0xff]
        %v478 = vld [vmem:[%s403 + $0x140] sm:$0xff]
        %v479 = vld [vmem:[%s403 + $0x148] sm:$0xff]
        %v480 = vld [vmem:[%s403 + $0x150] sm:$0xff]
        %v481 = vld [vmem:[%s403 + $0x158] sm:$0xff]
        %v482 = vld [vmem:[%s403 + $0x160] sm:$0xff]
        %v483 = vld [vmem:[%s403 + $0x168] sm:$0xff]
        %v484 = vld [vmem:[%s403 + $0x170] sm:$0xff]
        %v485 = vld [vmem:[%s403 + $0x178] sm:$0xff]
        %v486 = vld [vmem:[%s403 + $0x180] sm:$0xff]
        %v487 = vld [vmem:[%s403 + $0x188] sm:$0xff]
        %v488 = vld [vmem:[%s403 + $0x190] sm:$0xff]
        %v489 = vld [vmem:[%s403 + $0x198] sm:$0xff]
        %v490 = vld [vmem:[%s403 + $0x1a0] sm:$0xff]
        %v491 = vld [vmem:[%s403 + $0x1a8] sm:$0xff]
        %v492 = vld [vmem:[%s403 + $0x1b0] sm:$0xff]
        %v493 = vld [vmem:[%s403 + $0x1b8] sm:$0xff]
        %v494 = vld [vmem:[%s403 + $0x1c0] sm:$0xff]
        %v495 = vld [vmem:[%s403 + $0x1c8] sm:$0xff]
        %v496 = vld [vmem:[%s403 + $0x1d0] sm:$0xff]
        %v497 = vld [vmem:[%s403 + $0x1d8] sm:$0xff]
        %v498 = vld [vmem:[%s403 + $0x1e0] sm:$0xff]
        %v499 = vld [vmem:[%s403 + $0x1e8] sm:$0xff]
        %v500 = vld [vmem:[%s403 + $0x1f0] sm:$0xff]
        %v501 = vld [vmem:[%s403 + $0x1f8] sm:$0xff]
        %v502 = vld [vmem:[%s3] sm:$0xff]
        %v503 = vld [vmem:[%s3 + $0x8] sm:$0xff]
        %v504 = vld [vmem:[%s3 + $0x10] sm:$0xff]
        %v505 = vld [vmem:[%s3 + $0x18] sm:$0xff]
        %v506 = vld [vmem:[%s3 + $0x20] sm:$0xff]
        %v507 = vld [vmem:[%s3 + $0x28] sm:$0xff]
        %v508 = vld [vmem:[%s3 + $0x30] sm:$0xff]
        %v509 = vld [vmem:[%s3 + $0x38] sm:$0xff]
        %v510 = vld [vmem:[%s417] sm:$0xff]
        %v511 = vld [vmem:[%s417 + $0x8] sm:$0xff]
        %v512 = vld [vmem:[%s417 + $0x10] sm:$0xff]
        %v513 = vld [vmem:[%s417 + $0x18] sm:$0xff]
        %v514 = vld [vmem:[%s417 + $0x20] sm:$0xff]
        %v515 = vld [vmem:[%s417 + $0x28] sm:$0xff]
        %v516 = vld [vmem:[%s417 + $0x30] sm:$0xff]
        %v517 = vld [vmem:[%s417 + $0x38] sm:$0xff]
        %v518 = vld [vmem:[%s417 + $0x40] sm:$0xff]
        %v519 = vld [vmem:[%s417 + $0x48] sm:$0xff]
        %v520 = vld [vmem:[%s417 + $0x50] sm:$0xff]
        %v521 = vld [vmem:[%s417 + $0x58] sm:$0xff]
        %v522 = vld [vmem:[%s417 + $0x60] sm:$0xff]
        %v523 = vld [vmem:[%s417 + $0x68] sm:$0xff]
        %v524 = vld [vmem:[%s417 + $0x70] sm:$0xff]
        %v525 = vld [vmem:[%s417 + $0x78] sm:$0xff]
        %v526 = vld [vmem:[%s417 + $0x80] sm:$0xff]
        %v527 = vld [vmem:[%s417 + $0x88] sm:$0xff]
        %v528 = vld [vmem:[%s417 + $0x90] sm:$0xff]
        %v529 = vld [vmem:[%s417 + $0x98] sm:$0xff]
        %v530 = vld [vmem:[%s417 + $0xa0] sm:$0xff]
        %v531 = vld [vmem:[%s417 + $0xa8] sm:$0xff]
        %v532 = vld [vmem:[%s417 + $0xb0] sm:$0xff]
        %v533 = vld [vmem:[%s417 + $0xb8] sm:$0xff]
        %v534 = vld [vmem:[%s417 + $0xc0] sm:$0xff]
        %v535 = vld [vmem:[%s417 + $0xc8] sm:$0xff]
        %v536 = vld [vmem:[%s417 + $0xd0] sm:$0xff]
        %v537 = vld [vmem:[%s417 + $0xd8] sm:$0xff]
        %v538 = vld [vmem:[%s417 + $0xe0] sm:$0xff]
        %v539 = vld [vmem:[%s417 + $0xe8] sm:$0xff]
        %v540 = vld [vmem:[%s417 + $0xf0] sm:$0xff]
        %v541 = vld [vmem:[%s417 + $0xf8] sm:$0xff]
        %v542 = vld [vmem:[%s417 + $0x100] sm:$0xff]
        %v543 = vld [vmem:[%s417 + $0x108] sm:$0xff]
        %v544 = vld [vmem:[%s417 + $0x110] sm:$0xff]
        %v545 = vld [vmem:[%s417 + $0x118] sm:$0xff]
        %v546 = vld [vmem:[%s417 + $0x120] sm:$0xff]
        %v547 = vld [vmem:[%s417 + $0x128] sm:$0xff]
        %v548 = vld [vmem:[%s417 + $0x130] sm:$0xff]
        %v549 = vld [vmem:[%s417 + $0x138] sm:$0xff]
        %v550 = vld [vmem:[%s417 + $0x140] sm:$0xff]
        %v551 = vld [vmem:[%s417 + $0x148] sm:$0xff]
        %v552 = vld [vmem:[%s417 + $0x150] sm:$0xff]
        %v553 = vld [vmem:[%s417 + $0x158] sm:$0xff]
        %v554 = vld [vmem:[%s417 + $0x160] sm:$0xff]
        %v555 = vld [vmem:[%s417 + $0x168] sm:$0xff]
        %v556 = vld [vmem:[%s417 + $0x170] sm:$0xff]
        %v557 = vld [vmem:[%s417 + $0x178] sm:$0xff]
        %v558 = vld [vmem:[%s417 + $0x180] sm:$0xff]
        %v559 = vld [vmem:[%s417 + $0x188] sm:$0xff]
        %v560 = vld [vmem:[%s417 + $0x190] sm:$0xff]
        %v561 = vld [vmem:[%s417 + $0x198] sm:$0xff]
        %v562 = vld [vmem:[%s417 + $0x1a0] sm:$0xff]
        %v563 = vld [vmem:[%s417 + $0x1a8] sm:$0xff]
        %v564 = vld [vmem:[%s417 + $0x1b0] sm:$0xff]
        %v565 = vld [vmem:[%s417 + $0x1b8] sm:$0xff]
        %v566 = vld [vmem:[%s417 + $0x1c0] sm:$0xff]
        %v567 = vld [vmem:[%s417 + $0x1c8] sm:$0xff]
        %v568 = vld [vmem:[%s417 + $0x1d0] sm:$0xff]
        %v569 = vld [vmem:[%s417 + $0x1d8] sm:$0xff]
        %v570 = vld [vmem:[%s417 + $0x1e0] sm:$0xff]
        %v571 = vld [vmem:[%s417 + $0x1e8] sm:$0xff]
        %v572 = vld [vmem:[%s417 + $0x1f0] sm:$0xff]
        %v573 = vld [vmem:[%s417 + $0x1f8] sm:$0xff]
        %v574 = vld [vmem:[%s4] sm:$0xff]
        %v575 = vld [vmem:[%s4 + $0x8] sm:$0xff]
        %v576 = vld [vmem:[%s4 + $0x10] sm:$0xff]
        %v577 = vld [vmem:[%s4 + $0x18] sm:$0xff]
        %vm578 = vcmask 261120
        %v580 = vsel %vm578, %v510, 0
        %v583 = vsel %vm578, %v511, 0
        %v586 = vsel %vm578, %v512, 0
        %v589 = vsel %vm578, %v513, 0
        %v592 = vsel %vm578, %v514, 0
        %v595 = vsel %vm578, %v515, 0
        %v598 = vsel %vm578, %v516, 0
        %v601 = vsel %vm578, %v517, 0
        %v604 = vsel %vm578, %v518, 0
        %v607 = vsel %vm578, %v519, 0
        %v610 = vsel %vm578, %v520, 0
        %v613 = vsel %vm578, %v521, 0
        %v616 = vsel %vm578, %v522, 0
        %v619 = vsel %vm578, %v523, 0
        %v622 = vsel %vm578, %v524, 0
        %v625 = vsel %vm578, %v525, 0
        %v628 = vsel %vm578, %v526, 0
        %v631 = vsel %vm578, %v527, 0
        %v634 = vsel %vm578, %v528, 0
        %v637 = vsel %vm578, %v529, 0
        %v640 = vsel %vm578, %v530, 0
        %v643 = vsel %vm578, %v531, 0
        %v646 = vsel %vm578, %v532, 0
        %v649 = vsel %vm578, %v533, 0
        %v652 = vsel %vm578, %v534, 0
        %v655 = vsel %vm578, %v535, 0
        %v658 = vsel %vm578, %v536, 0
        %v661 = vsel %vm578, %v537, 0
        %v664 = vsel %vm578, %v538, 0
        %v667 = vsel %vm578, %v539, 0
        %v670 = vsel %vm578, %v540, 0
        %v673 = vsel %vm578, %v541, 0
        %v676 = vsel %vm578, %v542, 0
        %v679 = vsel %vm578, %v543, 0
        %v682 = vsel %vm578, %v544, 0
        %v685 = vsel %vm578, %v545, 0
        %v688 = vsel %vm578, %v546, 0
        %v691 = vsel %vm578, %v547, 0
        %v694 = vsel %vm578, %v548, 0
        %v697 = vsel %vm578, %v549, 0
        %v700 = vsel %vm578, %v550, 0
        %v703 = vsel %vm578, %v551, 0
        %v706 = vsel %vm578, %v552, 0
        %v709 = vsel %vm578, %v553, 0
        %v712 = vsel %vm578, %v554, 0
        %v715 = vsel %vm578, %v555, 0
        %v718 = vsel %vm578, %v556, 0
        %v721 = vsel %vm578, %v557, 0
        %v724 = vsel %vm578, %v558, 0
        %v727 = vsel %vm578, %v559, 0
        %v730 = vsel %vm578, %v560, 0
        %v733 = vsel %vm578, %v561, 0
        %v736 = vsel %vm578, %v562, 0
        %v739 = vsel %vm578, %v563, 0
        %v742 = vsel %vm578, %v564, 0
        %v745 = vsel %vm578, %v565, 0
        %v748 = vsel %vm578, %v566, 0
        %v751 = vsel %vm578, %v567, 0
        %v754 = vsel %vm578, %v568, 0
        %v757 = vsel %vm578, %v569, 0
        %v760 = vsel %vm578, %v570, 0
        %v763 = vsel %vm578, %v571, 0
        %v766 = vsel %vm578, %v572, 0
        %v769 = vsel %vm578, %v573, 0
        %771 = vmatprep.subr.mxu0 0.0
        %772 = vmatpush1.msra.mxu0 %v574
        %773 = vmatprep.subr.mxu0 0.0
        %774 = vmatpush1.msra.mxu0 %v575
        %775 = vmatprep.subr.mxu0 0.0
        %776 = vmatpush1.msra.mxu0 %v576
        %777 = vmatprep.subr.mxu0 0.0
        %778 = vmatpush1.msra.mxu0 %v577
        %779 = vmatprep.subr.mxu0 0.0
        %780 = vmatpush1.msra.mxu0 0.0
        %781 = vmatprep.subr.mxu0 0.0
        %782 = vmatpush1.msra.mxu0 0.0
        %783 = vmatprep.subr.mxu0 0.0
        %784 = vmatpush1.msra.mxu0 0.0
        %785 = vmatprep.subr.mxu0 0.0
        %786 = vmatpush1.msra.mxu0 0.0
        %787 = vmatprep.subr.mxu0 0.0
        %788 = vmatpush1.msra.mxu0 0.0
        %789 = vmatprep.subr.mxu0 0.0
        %790 = vmatpush1.msra.mxu0 0.0
        %791 = vmatprep.subr.mxu0 0.0
        %792 = vmatpush1.msra.mxu0 0.0
        %793 = vmatprep.subr.mxu0 0.0
        %794 = vmatpush1.msra.mxu0 0.0
        %795 = vmatprep.subr.mxu0 0.0
        %796 = vmatpush1.msra.mxu0 0.0
        %797 = vmatprep.subr.mxu0 0.0
        %798 = vmatpush1.msra.mxu0 0.0
        %799 = vmatprep.subr.mxu0 0.0
        %800 = vmatpush1.msra.mxu0 0.0
        %801 = vmatprep.subr.mxu0 0.0
        %802 = vmatpush1.msra.mxu0 0.0
        %803 = vmatprep.subr.mxu0 0.0
        %804 = vmatpush1.msra.mxu0 0.0
        %805 = vmatprep.subr.mxu0 0.0
        %806 = vmatpush1.msra.mxu0 0.0
        %807 = vmatprep.subr.mxu0 0.0
        %808 = vmatpush1.msra.mxu0 0.0
        %809 = vmatprep.subr.mxu0 0.0
        %810 = vmatpush1.msra.mxu0 0.0
        %811 = vmatprep.subr.mxu0 0.0
        %812 = vmatpush1.msra.mxu0 0.0
        %813 = vmatprep.subr.mxu0 0.0
        %814 = vmatpush1.msra.mxu0 0.0
        %815 = vmatprep.subr.mxu0 0.0
        %816 = vmatpush1.msra.mxu0 0.0
        %817 = vmatprep.subr.mxu0 0.0
        %818 = vmatpush1.msra.mxu0 0.0
        %819 = vmatprep.subr.mxu0 0.0
        %820 = vmatpush1.msra.mxu0 0.0
        %821 = vmatprep.subr.mxu0 0.0
        %822 = vmatpush1.msra.mxu0 0.0
        %823 = vmatprep.subr.mxu0 0.0
        %824 = vmatpush1.msra.mxu0 0.0
        %825 = vmatprep.subr.mxu0 0.0
        %826 = vmatpush1.msra.mxu0 0.0
        %827 = vmatprep.subr.mxu0 0.0
        %828 = vmatpush1.msra.mxu0 0.0
        %829 = vmatprep.subr.mxu0 0.0
        %830 = vmatpush1.msra.mxu0 0.0
        %831 = vmatprep.subr.mxu0 0.0
        %832 = vmatpush1.msra.mxu0 0.0
        %833 = vmatprep.subr.mxu0 0.0
        %834 = vmatpush1.msra.mxu0 0.0
        %835 = vmatprep.mubr.f32.mxu0 0.0
        %836 = vmatmul.mubr.f32.gmra.mrb[0].mxu0 %v580
        %v837 = vpop.f32.mrb[0].mxu0
        %v838 = vadd.f32 0.0, %v837
        %v839 = vpop.f32.mrb[0].mxu0
        %840 = vmatprep.mubr.f32.mxu0 0.0
        %841 = vmatmul.mubr.f32.gmra.mrb[0].mxu0 %v583
        %v842 = vpop.f32.mrb[0].mxu0
        %v843 = vadd.f32 0.0, %v842
        %v844 = vpop.f32.mrb[0].mxu0
        %845 = vmatprep.mubr.f32.mxu0 0.0
        %846 = vmatmul.mubr.f32.gmra.mrb[0].mxu0 %v586
        %v847 = vpop.f32.mrb[0].mxu0
        %v848 = vadd.f32 0.0, %v847
        %v849 = vpop.f32.mrb[0].mxu0
        %850 = vmatprep.mubr.f32.mxu0 0.0
        %851 = vmatmul.mubr.f32.gmra.mrb[0].mxu0 %v589
        %v852 = vpop.f32.mrb[0].mxu0
        %v853 = vadd.f32 0.0, %v852
        %v854 = vpop.f32.mrb[0].mxu0
        %855 = vmatprep.mubr.f32.mxu0 0.0
        %856 = vmatmul.mubr.f32.gmra.mrb[0].mxu0 %v592
        %v857 = vpop.f32.mrb[0].mxu0
        %v858 = vadd.f32 0.0, %v857
        %v859 = vpop.f32.mrb[0].mxu0
        %860 = vmatprep.mubr.f32.mxu0 0.0
        %861 = vmatmul.mubr.f32.gmra.mrb[0].mxu0 %v595
        %v862 = vpop.f32.mrb[0].mxu0
        %v863 = vadd.f32 0.0, %v862
        %v864 = vpop.f32.mrb[0].mxu0
        %865 = vmatprep.mubr.f32.mxu0 0.0
        %866 = vmatmul.mubr.f32.gmra.mrb[0].mxu0 %v598
        %v867 = vpop.f32.mrb[0].mxu0
        %v868 = vadd.f32 0.0, %v867
        %v869 = vpop.f32.mrb[0].mxu0
        %870 = vmatprep.mubr.f32.mxu0 0.0
        %871 = vmatmul.mubr.f32.gmra.mrb[0].mxu0 %v601
        %v872 = vpop.f32.mrb[0].mxu0
        %v873 = vadd.f32 0.0, %v872
        %v874 = vpop.f32.mrb[0].mxu0
        %875 = vmatprep.mubr.f32.mxu0 0.0
        %876 = vmatmul.mubr.f32.gmra.mrb[0].mxu0 %v604
        %v877 = vpop.f32.mrb[0].mxu0
        %v878 = vadd.f32 0.0, %v877
        %v879 = vpop.f32.mrb[0].mxu0
        %880 = vmatprep.mubr.f32.mxu0 0.0
        %881 = vmatmul.mubr.f32.gmra.mrb[0].mxu0 %v607
        %v882 = vpop.f32.mrb[0].mxu0
        %v883 = vadd.f32 0.0, %v882
        %v884 = vpop.f32.mrb[0].mxu0
        %885 = vmatprep.mubr.f32.mxu0 0.0
        %886 = vmatmul.mubr.f32.gmra.mrb[0].mxu0 %v610
        %v887 = vpop.f32.mrb[0].mxu0
        %v888 = vadd.f32 0.0, %v887
        %v889 = vpop.f32.mrb[0].mxu0
        %890 = vmatprep.mubr.f32.mxu0 0.0
        %891 = vmatmul.mubr.f32.gmra.mrb[0].mxu0 %v613
        %v892 = vpop.f32.mrb[0].mxu0
        %v893 = vadd.f32 0.0, %v892
        %v894 = vpop.f32.mrb[0].mxu0
        %895 = vmatprep.mubr.f32.mxu0 0.0
        %896 = vmatmul.mubr.f32.gmra.mrb[0].mxu0 %v616
        %v897 = vpop.f32.mrb[0].mxu0
        %v898 = vadd.f32 0.0, %v897
        %v899 = vpop.f32.mrb[0].mxu0
        %900 = vmatprep.mubr.f32.mxu0 0.0
        %901 = vmatmul.mubr.f32.gmra.mrb[0].mxu0 %v619
        %v902 = vpop.f32.mrb[0].mxu0
        %v903 = vadd.f32 0.0, %v902
        %v904 = vpop.f32.mrb[0].mxu0
        %905 = vmatprep.mubr.f32.mxu0 0.0
        %906 = vmatmul.mubr.f32.gmra.mrb[0].mxu0 %v622
        %v907 = vpop.f32.mrb[0].mxu0
        %v908 = vadd.f32 0.0, %v907
        %v909 = vpop.f32.mrb[0].mxu0
        %910 = vmatprep.mubr.f32.mxu0 0.0
        %911 = vmatmul.mubr.f32.gmra.mrb[0].mxu0 %v625
        %v912 = vpop.f32.mrb[0].mxu0
        %v913 = vadd.f32 0.0, %v912
        %v914 = vpop.f32.mrb[0].mxu0
        %915 = vmatprep.mubr.f32.mxu0 0.0
        %916 = vmatmul.mubr.f32.gmra.mrb[0].mxu0 %v628
        %v917 = vpop.f32.mrb[0].mxu0
        %v918 = vadd.f32 0.0, %v917
        %v919 = vpop.f32.mrb[0].mxu0
        %920 = vmatprep.mubr.f32.mxu0 0.0
        %921 = vmatmul.mubr.f32.gmra.mrb[0].mxu0 %v631
        %v922 = vpop.f32.mrb[0].mxu0
        %v923 = vadd.f32 0.0, %v922
        %v924 = vpop.f32.mrb[0].mxu0
        %925 = vmatprep.mubr.f32.mxu0 0.0
        %926 = vmatmul.mubr.f32.gmra.mrb[0].mxu0 %v634
        %v927 = vpop.f32.mrb[0].mxu0
        %v928 = vadd.f32 0.0, %v927
        %v929 = vpop.f32.mrb[0].mxu0
        %930 = vmatprep.mubr.f32.mxu0 0.0
        %931 = vmatmul.mubr.f32.gmra.mrb[0].mxu0 %v637
        %v932 = vpop.f32.mrb[0].mxu0
        %v933 = vadd.f32 0.0, %v932
        %v934 = vpop.f32.mrb[0].mxu0
        %935 = vmatprep.mubr.f32.mxu0 0.0
        %936 = vmatmul.mubr.f32.gmra.mrb[0].mxu0 %v640
        %v937 = vpop.f32.mrb[0].mxu0
        %v938 = vadd.f32 0.0, %v937
        %v939 = vpop.f32.mrb[0].mxu0
        %940 = vmatprep.mubr.f32.mxu0 0.0
        %941 = vmatmul.mubr.f32.gmra.mrb[0].mxu0 %v643
        %v942 = vpop.f32.mrb[0].mxu0
        %v943 = vadd.f32 0.0, %v942
        %v944 = vpop.f32.mrb[0].mxu0
        %945 = vmatprep.mubr.f32.mxu0 0.0
        %946 = vmatmul.mubr.f32.gmra.mrb[0].mxu0 %v646
        %v947 = vpop.f32.mrb[0].mxu0
        %v948 = vadd.f32 0.0, %v947
        %v949 = vpop.f32.mrb[0].mxu0
        %950 = vmatprep.mubr.f32.mxu0 0.0
        %951 = vmatmul.mubr.f32.gmra.mrb[0].mxu0 %v649
        %v952 = vpop.f32.mrb[0].mxu0
        %v953 = vadd.f32 0.0, %v952
        %v954 = vpop.f32.mrb[0].mxu0
        %955 = vmatprep.mubr.f32.mxu0 0.0
        %956 = vmatmul.mubr.f32.gmra.mrb[0].mxu0 %v652
        %v957 = vpop.f32.mrb[0].mxu0
        %v958 = vadd.f32 0.0, %v957
        %v959 = vpop.f32.mrb[0].mxu0
        %960 = vmatprep.mubr.f32.mxu0 0.0
        %961 = vmatmul.mubr.f32.gmra.mrb[0].mxu0 %v655
        %v962 = vpop.f32.mrb[0].mxu0
        %v963 = vadd.f32 0.0, %v962
        %v964 = vpop.f32.mrb[0].mxu0
        %965 = vmatprep.mubr.f32.mxu0 0.0
        %966 = vmatmul.mubr.f32.gmra.mrb[0].mxu0 %v658
        %v967 = vpop.f32.mrb[0].mxu0
        %v968 = vadd.f32 0.0, %v967
        %v969 = vpop.f32.mrb[0].mxu0
        %970 = vmatprep.mubr.f32.mxu0 0.0
        %971 = vmatmul.mubr.f32.gmra.mrb[0].mxu0 %v661
        %v972 = vpop.f32.mrb[0].mxu0
        %v973 = vadd.f32 0.0, %v972
        %v974 = vpop.f32.mrb[0].mxu0
        %975 = vmatprep.mubr.f32.mxu0 0.0
        %976 = vmatmul.mubr.f32.gmra.mrb[0].mxu0 %v664
        %v977 = vpop.f32.mrb[0].mxu0
        %v978 = vadd.f32 0.0, %v977
        %v979 = vpop.f32.mrb[0].mxu0
        %980 = vmatprep.mubr.f32.mxu0 0.0
        %981 = vmatmul.mubr.f32.gmra.mrb[0].mxu0 %v667
        %v982 = vpop.f32.mrb[0].mxu0
        %v983 = vadd.f32 0.0, %v982
        %v984 = vpop.f32.mrb[0].mxu0
        %985 = vmatprep.mubr.f32.mxu0 0.0
        %986 = vmatmul.mubr.f32.gmra.mrb[0].mxu0 %v670
        %v987 = vpop.f32.mrb[0].mxu0
        %v988 = vadd.f32 0.0, %v987
        %v989 = vpop.f32.mrb[0].mxu0
        %990 = vmatprep.mubr.f32.mxu0 0.0
        %991 = vmatmul.mubr.f32.gmra.mrb[0].mxu0 %v673
        %v992 = vpop.f32.mrb[0].mxu0
        %v993 = vadd.f32 0.0, %v992
        %v994 = vpop.f32.mrb[0].mxu0
        %995 = vmatprep.mubr.f32.mxu0 0.0
        %996 = vmatmul.mubr.f32.gmra.mrb[0].mxu0 %v676
        %v997 = vpop.f32.mrb[0].mxu0
        %v998 = vadd.f32 0.0, %v997
        %v999 = vpop.f32.mrb[0].mxu0
        %1000 = vmatprep.mubr.f32.mxu0 0.0
        %1001 = vmatmul.mubr.f32.gmra.mrb[0].mxu0 %v679
        %v1002 = vpop.f32.mrb[0].mxu0
        %v1003 = vadd.f32 0.0, %v1002
        %v1004 = vpop.f32.mrb[0].mxu0
        %1005 = vmatprep.mubr.f32.mxu0 0.0
        %1006 = vmatmul.mubr.f32.gmra.mrb[0].mxu0 %v682
        %v1007 = vpop.f32.mrb[0].mxu0
        %v1008 = vadd.f32 0.0, %v1007
        %v1009 = vpop.f32.mrb[0].mxu0
        %1010 = vmatprep.mubr.f32.mxu0 0.0
        %1011 = vmatmul.mubr.f32.gmra.mrb[0].mxu0 %v685
        %v1012 = vpop.f32.mrb[0].mxu0
        %v1013 = vadd.f32 0.0, %v1012
        %v1014 = vpop.f32.mrb[0].mxu0
        %1015 = vmatprep.mubr.f32.mxu0 0.0
        %1016 = vmatmul.mubr.f32.gmra.mrb[0].mxu0 %v688
        %v1017 = vpop.f32.mrb[0].mxu0
        %v1018 = vadd.f32 0.0, %v1017
        %v1019 = vpop.f32.mrb[0].mxu0
        %1020 = vmatprep.mubr.f32.mxu0 0.0
        %1021 = vmatmul.mubr.f32.gmra.mrb[0].mxu0 %v691
        %v1022 = vpop.f32.mrb[0].mxu0
        %v1023 = vadd.f32 0.0, %v1022
        %v1024 = vpop.f32.mrb[0].mxu0
        %1025 = vmatprep.mubr.f32.mxu0 0.0
        %1026 = vmatmul.mubr.f32.gmra.mrb[0].mxu0 %v694
        %v1027 = vpop.f32.mrb[0].mxu0
        %v1028 = vadd.f32 0.0, %v1027
        %v1029 = vpop.f32.mrb[0].mxu0
        %1030 = vmatprep.mubr.f32.mxu0 0.0
        %1031 = vmatmul.mubr.f32.gmra.mrb[0].mxu0 %v697
        %v1032 = vpop.f32.mrb[0].mxu0
        %v1033 = vadd.f32 0.0, %v1032
        %v1034 = vpop.f32.mrb[0].mxu0
        %1035 = vmatprep.mubr.f32.mxu0 0.0
        %1036 = vmatmul.mubr.f32.gmra.mrb[0].mxu0 %v700
        %v1037 = vpop.f32.mrb[0].mxu0
        %v1038 = vadd.f32 0.0, %v1037
        %v1039 = vpop.f32.mrb[0].mxu0
        %1040 = vmatprep.mubr.f32.mxu0 0.0
        %1041 = vmatmul.mubr.f32.gmra.mrb[0].mxu0 %v703
        %v1042 = vpop.f32.mrb[0].mxu0
        %v1043 = vadd.f32 0.0, %v1042
        %v1044 = vpop.f32.mrb[0].mxu0
        %1045 = vmatprep.mubr.f32.mxu0 0.0
        %1046 = vmatmul.mubr.f32.gmra.mrb[0].mxu0 %v706
        %v1047 = vpop.f32.mrb[0].mxu0
        %v1048 = vadd.f32 0.0, %v1047
        %v1049 = vpop.f32.mrb[0].mxu0
        %1050 = vmatprep.mubr.f32.mxu0 0.0
        %1051 = vmatmul.mubr.f32.gmra.mrb[0].mxu0 %v709
        %v1052 = vpop.f32.mrb[0].mxu0
        %v1053 = vadd.f32 0.0, %v1052
        %v1054 = vpop.f32.mrb[0].mxu0
        %1055 = vmatprep.mubr.f32.mxu0 0.0
        %1056 = vmatmul.mubr.f32.gmra.mrb[0].mxu0 %v712
        %v1057 = vpop.f32.mrb[0].mxu0
        %v1058 = vadd.f32 0.0, %v1057
        %v1059 = vpop.f32.mrb[0].mxu0
        %1060 = vmatprep.mubr.f32.mxu0 0.0
        %1061 = vmatmul.mubr.f32.gmra.mrb[0].mxu0 %v715
        %v1062 = vpop.f32.mrb[0].mxu0
        %v1063 = vadd.f32 0.0, %v1062
        %v1064 = vpop.f32.mrb[0].mxu0
        %1065 = vmatprep.mubr.f32.mxu0 0.0
        %1066 = vmatmul.mubr.f32.gmra.mrb[0].mxu0 %v718
        %v1067 = vpop.f32.mrb[0].mxu0
        %v1068 = vadd.f32 0.0, %v1067
        %v1069 = vpop.f32.mrb[0].mxu0
        %1070 = vmatprep.mubr.f32.mxu0 0.0
        %1071 = vmatmul.mubr.f32.gmra.mrb[0].mxu0 %v721
        %v1072 = vpop.f32.mrb[0].mxu0
        %v1073 = vadd.f32 0.0, %v1072
        %v1074 = vpop.f32.mrb[0].mxu0
        %1075 = vmatprep.mubr.f32.mxu0 0.0
        %1076 = vmatmul.mubr.f32.gmra.mrb[0].mxu0 %v724
        %v1077 = vpop.f32.mrb[0].mxu0
        %v1078 = vadd.f32 0.0, %v1077
        %v1079 = vpop.f32.mrb[0].mxu0
        %1080 = vmatprep.mubr.f32.mxu0 0.0
        %1081 = vmatmul.mubr.f32.gmra.mrb[0].mxu0 %v727
        %v1082 = vpop.f32.mrb[0].mxu0
        %v1083 = vadd.f32 0.0, %v1082
        %v1084 = vpop.f32.mrb[0].mxu0
        %1085 = vmatprep.mubr.f32.mxu0 0.0
        %1086 = vmatmul.mubr.f32.gmra.mrb[0].mxu0 %v730
        %v1087 = vpop.f32.mrb[0].mxu0
        %v1088 = vadd.f32 0.0, %v1087
        %v1089 = vpop.f32.mrb[0].mxu0
        %1090 = vmatprep.mubr.f32.mxu0 0.0
        %1091 = vmatmul.mubr.f32.gmra.mrb[0].mxu0 %v733
        %v1092 = vpop.f32.mrb[0].mxu0
        %v1093 = vadd.f32 0.0, %v1092
        %v1094 = vpop.f32.mrb[0].mxu0
        %1095 = vmatprep.mubr.f32.mxu0 0.0
        %1096 = vmatmul.mubr.f32.gmra.mrb[0].mxu0 %v736
        %v1097 = vpop.f32.mrb[0].mxu0
        %v1098 = vadd.f32 0.0, %v1097
        %v1099 = vpop.f32.mrb[0].mxu0
        %1100 = vmatprep.mubr.f32.mxu0 0.0
        %1101 = vmatmul.mubr.f32.gmra.mrb[0].mxu0 %v739
        %v1102 = vpop.f32.mrb[0].mxu0
        %v1103 = vadd.f32 0.0, %v1102
        %v1104 = vpop.f32.mrb[0].mxu0
        %1105 = vmatprep.mubr.f32.mxu0 0.0
        %1106 = vmatmul.mubr.f32.gmra.mrb[0].mxu0 %v742
        %v1107 = vpop.f32.mrb[0].mxu0
        %v1108 = vadd.f32 0.0, %v1107
        %v1109 = vpop.f32.mrb[0].mxu0
        %1110 = vmatprep.mubr.f32.mxu0 0.0
        %1111 = vmatmul.mubr.f32.gmra.mrb[0].mxu0 %v745
        %v1112 = vpop.f32.mrb[0].mxu0
        %v1113 = vadd.f32 0.0, %v1112
        %v1114 = vpop.f32.mrb[0].mxu0
        %1115 = vmatprep.mubr.f32.mxu0 0.0
        %1116 = vmatmul.mubr.f32.gmra.mrb[0].mxu0 %v748
        %v1117 = vpop.f32.mrb[0].mxu0
        %v1118 = vadd.f32 0.0, %v1117
        %v1119 = vpop.f32.mrb[0].mxu0
        %1120 = vmatprep.mubr.f32.mxu0 0.0
        %1121 = vmatmul.mubr.f32.gmra.mrb[0].mxu0 %v751
        %v1122 = vpop.f32.mrb[0].mxu0
        %v1123 = vadd.f32 0.0, %v1122
        %v1124 = vpop.f32.mrb[0].mxu0
        %1125 = vmatprep.mubr.f32.mxu0 0.0
        %1126 = vmatmul.mubr.f32.gmra.mrb[0].mxu0 %v754
        %v1127 = vpop.f32.mrb[0].mxu0
        %v1128 = vadd.f32 0.0, %v1127
        %v1129 = vpop.f32.mrb[0].mxu0
        %1130 = vmatprep.mubr.f32.mxu0 0.0
        %1131 = vmatmul.mubr.f32.gmra.mrb[0].mxu0 %v757
        %v1132 = vpop.f32.mrb[0].mxu0
        %v1133 = vadd.f32 0.0, %v1132
        %v1134 = vpop.f32.mrb[0].mxu0
        %1135 = vmatprep.mubr.f32.mxu0 0.0
        %1136 = vmatmul.mubr.f32.gmra.mrb[0].mxu0 %v760
        %v1137 = vpop.f32.mrb[0].mxu0
        %v1138 = vadd.f32 0.0, %v1137
        %v1139 = vpop.f32.mrb[0].mxu0
        %1140 = vmatprep.mubr.f32.mxu0 0.0
        %1141 = vmatmul.mubr.f32.gmra.mrb[0].mxu0 %v763
        %v1142 = vpop.f32.mrb[0].mxu0
        %v1143 = vadd.f32 0.0, %v1142
        %v1144 = vpop.f32.mrb[0].mxu0
        %1145 = vmatprep.mubr.f32.mxu0 0.0
        %1146 = vmatmul.mubr.f32.gmra.mrb[0].mxu0 %v766
        %v1147 = vpop.f32.mrb[0].mxu0
        %v1148 = vadd.f32 0.0, %v1147
        %v1149 = vpop.f32.mrb[0].mxu0
        %1150 = vmatprep.mubr.f32.mxu0 0.0
        %1151 = vmatmul.mubr.f32.gmra.mrb[0].mxu0 %v769
        %v1152 = vpop.f32.mrb[0].mxu0
        %v1153 = vadd.f32 0.0, %v1152
        %v1154 = vpop.f32.mrb[0].mxu0
        %1155 = vdwg.mxu0
        %vm1156 = vcmask 523264
        %v1158 = vsel %vm1156, %v438, 0
        %v1161 = vsel %vm1156, %v439, 0
        %v1164 = vsel %vm1156, %v440, 0
        %v1167 = vsel %vm1156, %v441, 0
        %v1170 = vsel %vm1156, %v442, 0
        %v1173 = vsel %vm1156, %v443, 0
        %v1176 = vsel %vm1156, %v444, 0
        %v1179 = vsel %vm1156, %v445, 0
        %v1182 = vsel %vm1156, %v446, 0
        %v1185 = vsel %vm1156, %v447, 0
        %v1188 = vsel %vm1156, %v448, 0
        %v1191 = vsel %vm1156, %v449, 0
        %v1194 = vsel %vm1156, %v450, 0
        %v1197 = vsel %vm1156, %v451, 0
        %v1200 = vsel %vm1156, %v452, 0
        %v1203 = vsel %vm1156, %v453, 0
        %v1206 = vsel %vm1156, %v454, 0
        %v1209 = vsel %vm1156, %v455, 0
        %v1212 = vsel %vm1156, %v456, 0
        %v1215 = vsel %vm1156, %v457, 0
        %v1218 = vsel %vm1156, %v458, 0
        %v1221 = vsel %vm1156, %v459, 0
        %v1224 = vsel %vm1156, %v460, 0
        %v1227 = vsel %vm1156, %v461, 0
        %v1230 = vsel %vm1156, %v462, 0
        %v1233 = vsel %vm1156, %v463, 0
        %v1236 = vsel %vm1156, %v464, 0
        %v1239 = vsel %vm1156, %v465, 0
        %v1242 = vsel %vm1156, %v466, 0
        %v1245 = vsel %vm1156, %v467, 0
        %v1248 = vsel %vm1156, %v468, 0
        %v1251 = vsel %vm1156, %v469, 0
        %v1254 = vsel %vm1156, %v470, 0
        %v1257 = vsel %vm1156, %v471, 0
        %v1260 = vsel %vm1156, %v472, 0
        %v1263 = vsel %vm1156, %v473, 0
        %v1266 = vsel %vm1156, %v474, 0
        %v1269 = vsel %vm1156, %v475, 0
        %v1272 = vsel %vm1156, %v476, 0
        %v1275 = vsel %vm1156, %v477, 0
        %v1278 = vsel %vm1156, %v478, 0
        %v1281 = vsel %vm1156, %v479, 0
        %v1284 = vsel %vm1156, %v480, 0
        %v1287 = vsel %vm1156, %v481, 0
        %v1290 = vsel %vm1156, %v482, 0
        %v1293 = vsel %vm1156, %v483, 0
        %v1296 = vsel %vm1156, %v484, 0
        %v1299 = vsel %vm1156, %v485, 0
        %v1302 = vsel %vm1156, %v486, 0
        %v1305 = vsel %vm1156, %v487, 0
        %v1308 = vsel %vm1156, %v488, 0
        %v1311 = vsel %vm1156, %v489, 0
        %v1314 = vsel %vm1156, %v490, 0
        %v1317 = vsel %vm1156, %v491, 0
        %v1320 = vsel %vm1156, %v492, 0
        %v1323 = vsel %vm1156, %v493, 0
        %v1326 = vsel %vm1156, %v494, 0
        %v1329 = vsel %vm1156, %v495, 0
        %v1332 = vsel %vm1156, %v496, 0
        %v1335 = vsel %vm1156, %v497, 0
        %v1338 = vsel %vm1156, %v498, 0
        %v1341 = vsel %vm1156, %v499, 0
        %v1344 = vsel %vm1156, %v500, 0
        %v1347 = vsel %vm1156, %v501, 0
        %1349 = vmatprep.subr.mxu0 0.0
        %1350 = vmatpush1.msra.mxu0 %v502
        %1351 = vmatprep.subr.mxu0 0.0
        %1352 = vmatpush1.msra.mxu0 %v503
        %1353 = vmatprep.subr.mxu0 0.0
        %1354 = vmatpush1.msra.mxu0 %v504
        %1355 = vmatprep.subr.mxu0 0.0
        %1356 = vmatpush1.msra.mxu0 %v505
        %1357 = vmatprep.subr.mxu0 0.0
        %1358 = vmatpush1.msra.mxu0 %v506
        %1359 = vmatprep.subr.mxu0 0.0
        %1360 = vmatpush1.msra.mxu0 %v507
        %1361 = vmatprep.subr.mxu0 0.0
        %1362 = vmatpush1.msra.mxu0 %v508
        %1363 = vmatprep.subr.mxu0 0.0
        %1364 = vmatpush1.msra.mxu0 %v509
        %1365 = vmatprep.subr.mxu0 0.0
        %1366 = vmatpush1.msra.mxu0 0.0
        %1367 = vmatprep.subr.mxu0 0.0
        %1368 = vmatpush1.msra.mxu0 0.0
        %1369 = vmatprep.subr.mxu0 0.0
        %1370 = vmatpush1.msra.mxu0 0.0
        %1371 = vmatprep.subr.mxu0 0.0
        %1372 = vmatpush1.msra.mxu0 0.0
        %1373 = vmatprep.subr.mxu0 0.0
        %1374 = vmatpush1.msra.mxu0 0.0
        %1375 = vmatprep.subr.mxu0 0.0
        %1376 = vmatpush1.msra.mxu0 0.0
        %1377 = vmatprep.subr.mxu0 0.0
        %1378 = vmatpush1.msra.mxu0 0.0
        %1379 = vmatprep.subr.mxu0 0.0
        %1380 = vmatpush1.msra.mxu0 0.0
        %1381 = vmatprep.subr.mxu0 0.0
        %1382 = vmatpush1.msra.mxu0 0.0
        %1383 = vmatprep.subr.mxu0 0.0
        %1384 = vmatpush1.msra.mxu0 0.0
        %1385 = vmatprep.subr.mxu0 0.0
        %1386 = vmatpush1.msra.mxu0 0.0
        %1387 = vmatprep.subr.mxu0 0.0
        %1388 = vmatpush1.msra.mxu0 0.0
        %1389 = vmatprep.subr.mxu0 0.0
        %1390 = vmatpush1.msra.mxu0 0.0
        %1391 = vmatprep.subr.mxu0 0.0
        %1392 = vmatpush1.msra.mxu0 0.0
        %1393 = vmatprep.subr.mxu0 0.0
        %1394 = vmatpush1.msra.mxu0 0.0
        %1395 = vmatprep.subr.mxu0 0.0
        %1396 = vmatpush1.msra.mxu0 0.0
        %1397 = vmatprep.subr.mxu0 0.0
        %1398 = vmatpush1.msra.mxu0 0.0
        %1399 = vmatprep.subr.mxu0 0.0
        %1400 = vmatpush1.msra.mxu0 0.0
        %1401 = vmatprep.subr.mxu0 0.0
        %1402 = vmatpush1.msra.mxu0 0.0
        %1403 = vmatprep.subr.mxu0 0.0
        %1404 = vmatpush1.msra.mxu0 0.0
        %1405 = vmatprep.subr.mxu0 0.0
        %1406 = vmatpush1.msra.mxu0 0.0
        %1407 = vmatprep.subr.mxu0 0.0
        %1408 = vmatpush1.msra.mxu0 0.0
        %1409 = vmatprep.subr.mxu0 0.0
        %1410 = vmatpush1.msra.mxu0 0.0
        %1411 = vmatprep.subr.mxu0 0.0
        %1412 = vmatpush1.msra.mxu0 0.0
        %1413 = vmatprep.mubr.f32.mxu0 0.0
        %1414 = vmatmul.mubr.f32.gmra.mrb[0].mxu0 %v1158
        %v1415 = vpop.f32.mrb[0].mxu0
        %v1416 = vadd.f32 %v838, %v1415
        %v1417 = vpop.f32.mrb[0].mxu0
        %1418 = vmatprep.mubr.f32.mxu0 0.0
        %1419 = vmatmul.mubr.f32.gmra.mrb[0].mxu0 %v1161
        %v1420 = vpop.f32.mrb[0].mxu0
        %v1421 = vadd.f32 %v843, %v1420
        %v1422 = vpop.f32.mrb[0].mxu0
        %1423 = vmatprep.mubr.f32.mxu0 0.0
        %1424 = vmatmul.mubr.f32.gmra.mrb[0].mxu0 %v1164
        %v1425 = vpop.f32.mrb[0].mxu0
        %v1426 = vadd.f32 %v848, %v1425
        %v1427 = vpop.f32.mrb[0].mxu0
        %1428 = vmatprep.mubr.f32.mxu0 0.0
        %1429 = vmatmul.mubr.f32.gmra.mrb[0].mxu0 %v1167
        %v1430 = vpop.f32.mrb[0].mxu0
        %v1431 = vadd.f32 %v853, %v1430
        %v1432 = vpop.f32.mrb[0].mxu0
        %1433 = vmatprep.mubr.f32.mxu0 0.0
        %1434 = vmatmul.mubr.f32.gmra.mrb[0].mxu0 %v1170
        %v1435 = vpop.f32.mrb[0].mxu0
        %v1436 = vadd.f32 %v858, %v1435
        %v1437 = vpop.f32.mrb[0].mxu0
        %1438 = vmatprep.mubr.f32.mxu0 0.0
        %1439 = vmatmul.mubr.f32.gmra.mrb[0].mxu0 %v1173
        %v1440 = vpop.f32.mrb[0].mxu0
        %v1441 = vadd.f32 %v863, %v1440
        %v1442 = vpop.f32.mrb[0].mxu0
        %1443 = vmatprep.mubr.f32.mxu0 0.0
        %1444 = vmatmul.mubr.f32.gmra.mrb[0].mxu0 %v1176
        %v1445 = vpop.f32.mrb[0].mxu0
        %v1446 = vadd.f32 %v868, %v1445
        %v1447 = vpop.f32.mrb[0].mxu0
        %1448 = vmatprep.mubr.f32.mxu0 0.0
        %1449 = vmatmul.mubr.f32.gmra.mrb[0].mxu0 %v1179
        %v1450 = vpop.f32.mrb[0].mxu0
        %v1451 = vadd.f32 %v873, %v1450
        %v1452 = vpop.f32.mrb[0].mxu0
        %1453 = vmatprep.mubr.f32.mxu0 0.0
        %1454 = vmatmul.mubr.f32.gmra.mrb[0].mxu0 %v1182
        %v1455 = vpop.f32.mrb[0].mxu0
        %v1456 = vadd.f32 %v878, %v1455
        %v1457 = vpop.f32.mrb[0].mxu0
        %1458 = vmatprep.mubr.f32.mxu0 0.0
        %1459 = vmatmul.mubr.f32.gmra.mrb[0].mxu0 %v1185
        %v1460 = vpop.f32.mrb[0].mxu0
        %v1461 = vadd.f32 %v883, %v1460
        %v1462 = vpop.f32.mrb[0].mxu0
        %1463 = vmatprep.mubr.f32.mxu0 0.0
        %1464 = vmatmul.mubr.f32.gmra.mrb[0].mxu0 %v1188
        %v1465 = vpop.f32.mrb[0].mxu0
        %v1466 = vadd.f32 %v888, %v1465
        %v1467 = vpop.f32.mrb[0].mxu0
        %1468 = vmatprep.mubr.f32.mxu0 0.0
        %1469 = vmatmul.mubr.f32.gmra.mrb[0].mxu0 %v1191
        %v1470 = vpop.f32.mrb[0].mxu0
        %v1471 = vadd.f32 %v893, %v1470
        %v1472 = vpop.f32.mrb[0].mxu0
        %1473 = vmatprep.mubr.f32.mxu0 0.0
        %1474 = vmatmul.mubr.f32.gmra.mrb[0].mxu0 %v1194
        %v1475 = vpop.f32.mrb[0].mxu0
        %v1476 = vadd.f32 %v898, %v1475
        %v1477 = vpop.f32.mrb[0].mxu0
        %1478 = vmatprep.mubr.f32.mxu0 0.0
        %1479 = vmatmul.mubr.f32.gmra.mrb[0].mxu0 %v1197
        %v1480 = vpop.f32.mrb[0].mxu0
        %v1481 = vadd.f32 %v903, %v1480
        %v1482 = vpop.f32.mrb[0].mxu0
        %1483 = vmatprep.mubr.f32.mxu0 0.0
        %1484 = vmatmul.mubr.f32.gmra.mrb[0].mxu0 %v1200
        %v1485 = vpop.f32.mrb[0].mxu0
        %v1486 = vadd.f32 %v908, %v1485
        %v1487 = vpop.f32.mrb[0].mxu0
        %1488 = vmatprep.mubr.f32.mxu0 0.0
        %1489 = vmatmul.mubr.f32.gmra.mrb[0].mxu0 %v1203
        %v1490 = vpop.f32.mrb[0].mxu0
        %v1491 = vadd.f32 %v913, %v1490
        %v1492 = vpop.f32.mrb[0].mxu0
        %1493 = vmatprep.mubr.f32.mxu0 0.0
        %1494 = vmatmul.mubr.f32.gmra.mrb[0].mxu0 %v1206
        %v1495 = vpop.f32.mrb[0].mxu0
        %v1496 = vadd.f32 %v918, %v1495
        %v1497 = vpop.f32.mrb[0].mxu0
        %1498 = vmatprep.mubr.f32.mxu0 0.0
        %1499 = vmatmul.mubr.f32.gmra.mrb[0].mxu0 %v1209
        %v1500 = vpop.f32.mrb[0].mxu0
        %v1501 = vadd.f32 %v923, %v1500
        %v1502 = vpop.f32.mrb[0].mxu0
        %1503 = vmatprep.mubr.f32.mxu0 0.0
        %1504 = vmatmul.mubr.f32.gmra.mrb[0].mxu0 %v1212
        %v1505 = vpop.f32.mrb[0].mxu0
        %v1506 = vadd.f32 %v928, %v1505
        %v1507 = vpop.f32.mrb[0].mxu0
        %1508 = vmatprep.mubr.f32.mxu0 0.0
        %1509 = vmatmul.mubr.f32.gmra.mrb[0].mxu0 %v1215
        %v1510 = vpop.f32.mrb[0].mxu0
        %v1511 = vadd.f32 %v933, %v1510
        %v1512 = vpop.f32.mrb[0].mxu0
        %1513 = vmatprep.mubr.f32.mxu0 0.0
        %1514 = vmatmul.mubr.f32.gmra.mrb[0].mxu0 %v1218
        %v1515 = vpop.f32.mrb[0].mxu0
        %v1516 = vadd.f32 %v938, %v1515
        %v1517 = vpop.f32.mrb[0].mxu0
        %1518 = vmatprep.mubr.f32.mxu0 0.0
        %1519 = vmatmul.mubr.f32.gmra.mrb[0].mxu0 %v1221
        %v1520 = vpop.f32.mrb[0].mxu0
        %v1521 = vadd.f32 %v943, %v1520
        %v1522 = vpop.f32.mrb[0].mxu0
        %1523 = vmatprep.mubr.f32.mxu0 0.0
        %1524 = vmatmul.mubr.f32.gmra.mrb[0].mxu0 %v1224
        %v1525 = vpop.f32.mrb[0].mxu0
        %v1526 = vadd.f32 %v948, %v1525
        %v1527 = vpop.f32.mrb[0].mxu0
        %1528 = vmatprep.mubr.f32.mxu0 0.0
        %1529 = vmatmul.mubr.f32.gmra.mrb[0].mxu0 %v1227
        %v1530 = vpop.f32.mrb[0].mxu0
        %v1531 = vadd.f32 %v953, %v1530
        %v1532 = vpop.f32.mrb[0].mxu0
        %1533 = vmatprep.mubr.f32.mxu0 0.0
        %1534 = vmatmul.mubr.f32.gmra.mrb[0].mxu0 %v1230
        %v1535 = vpop.f32.mrb[0].mxu0
        %v1536 = vadd.f32 %v958, %v1535
        %v1537 = vpop.f32.mrb[0].mxu0
        %1538 = vmatprep.mubr.f32.mxu0 0.0
        %1539 = vmatmul.mubr.f32.gmra.mrb[0].mxu0 %v1233
        %v1540 = vpop.f32.mrb[0].mxu0
        %v1541 = vadd.f32 %v963, %v1540
        %v1542 = vpop.f32.mrb[0].mxu0
        %1543 = vmatprep.mubr.f32.mxu0 0.0
        %1544 = vmatmul.mubr.f32.gmra.mrb[0].mxu0 %v1236
        %v1545 = vpop.f32.mrb[0].mxu0
        %v1546 = vadd.f32 %v968, %v1545
        %v1547 = vpop.f32.mrb[0].mxu0
        %1548 = vmatprep.mubr.f32.mxu0 0.0
        %1549 = vmatmul.mubr.f32.gmra.mrb[0].mxu0 %v1239
        %v1550 = vpop.f32.mrb[0].mxu0
        %v1551 = vadd.f32 %v973, %v1550
        %v1552 = vpop.f32.mrb[0].mxu0
        %1553 = vmatprep.mubr.f32.mxu0 0.0
        %1554 = vmatmul.mubr.f32.gmra.mrb[0].mxu0 %v1242
        %v1555 = vpop.f32.mrb[0].mxu0
        %v1556 = vadd.f32 %v978, %v1555
        %v1557 = vpop.f32.mrb[0].mxu0
        %1558 = vmatprep.mubr.f32.mxu0 0.0
        %1559 = vmatmul.mubr.f32.gmra.mrb[0].mxu0 %v1245
        %v1560 = vpop.f32.mrb[0].mxu0
        %v1561 = vadd.f32 %v983, %v1560
        %v1562 = vpop.f32.mrb[0].mxu0
        %1563 = vmatprep.mubr.f32.mxu0 0.0
        %1564 = vmatmul.mubr.f32.gmra.mrb[0].mxu0 %v1248
        %v1565 = vpop.f32.mrb[0].mxu0
        %v1566 = vadd.f32 %v988, %v1565
        %v1567 = vpop.f32.mrb[0].mxu0
        %1568 = vmatprep.mubr.f32.mxu0 0.0
        %1569 = vmatmul.mubr.f32.gmra.mrb[0].mxu0 %v1251
        %v1570 = vpop.f32.mrb[0].mxu0
        %v1571 = vadd.f32 %v993, %v1570
        %v1572 = vpop.f32.mrb[0].mxu0
        %1573 = vmatprep.mubr.f32.mxu0 0.0
        %1574 = vmatmul.mubr.f32.gmra.mrb[0].mxu0 %v1254
        %v1575 = vpop.f32.mrb[0].mxu0
        %v1576 = vadd.f32 %v998, %v1575
        %v1577 = vpop.f32.mrb[0].mxu0
        %1578 = vmatprep.mubr.f32.mxu0 0.0
        %1579 = vmatmul.mubr.f32.gmra.mrb[0].mxu0 %v1257
        %v1580 = vpop.f32.mrb[0].mxu0
        %v1581 = vadd.f32 %v1003, %v1580
        %v1582 = vpop.f32.mrb[0].mxu0
        %1583 = vmatprep.mubr.f32.mxu0 0.0
        %1584 = vmatmul.mubr.f32.gmra.mrb[0].mxu0 %v1260
        %v1585 = vpop.f32.mrb[0].mxu0
        %v1586 = vadd.f32 %v1008, %v1585
        %v1587 = vpop.f32.mrb[0].mxu0
        %1588 = vmatprep.mubr.f32.mxu0 0.0
        %1589 = vmatmul.mubr.f32.gmra.mrb[0].mxu0 %v1263
        %v1590 = vpop.f32.mrb[0].mxu0
        %v1591 = vadd.f32 %v1013, %v1590
        %v1592 = vpop.f32.mrb[0].mxu0
        %1593 = vmatprep.mubr.f32.mxu0 0.0
        %1594 = vmatmul.mubr.f32.gmra.mrb[0].mxu0 %v1266
        %v1595 = vpop.f32.mrb[0].mxu0
        %v1596 = vadd.f32 %v1018, %v1595
        %v1597 = vpop.f32.mrb[0].mxu0
        %1598 = vmatprep.mubr.f32.mxu0 0.0
        %1599 = vmatmul.mubr.f32.gmra.mrb[0].mxu0 %v1269
        %v1600 = vpop.f32.mrb[0].mxu0
        %v1601 = vadd.f32 %v1023, %v1600
        %v1602 = vpop.f32.mrb[0].mxu0
        %1603 = vmatprep.mubr.f32.mxu0 0.0
        %1604 = vmatmul.mubr.f32.gmra.mrb[0].mxu0 %v1272
        %v1605 = vpop.f32.mrb[0].mxu0
        %v1606 = vadd.f32 %v1028, %v1605
        %v1607 = vpop.f32.mrb[0].mxu0
        %1608 = vmatprep.mubr.f32.mxu0 0.0
        %1609 = vmatmul.mubr.f32.gmra.mrb[0].mxu0 %v1275
        %v1610 = vpop.f32.mrb[0].mxu0
        %v1611 = vadd.f32 %v1033, %v1610
        %v1612 = vpop.f32.mrb[0].mxu0
        %1613 = vmatprep.mubr.f32.mxu0 0.0
        %1614 = vmatmul.mubr.f32.gmra.mrb[0].mxu0 %v1278
        %v1615 = vpop.f32.mrb[0].mxu0
        %v1616 = vadd.f32 %v1038, %v1615
        %v1617 = vpop.f32.mrb[0].mxu0
        %1618 = vmatprep.mubr.f32.mxu0 0.0
        %1619 = vmatmul.mubr.f32.gmra.mrb[0].mxu0 %v1281
        %v1620 = vpop.f32.mrb[0].mxu0
        %v1621 = vadd.f32 %v1043, %v1620
        %v1622 = vpop.f32.mrb[0].mxu0
        %1623 = vmatprep.mubr.f32.mxu0 0.0
        %1624 = vmatmul.mubr.f32.gmra.mrb[0].mxu0 %v1284
        %v1625 = vpop.f32.mrb[0].mxu0
        %v1626 = vadd.f32 %v1048, %v1625
        %v1627 = vpop.f32.mrb[0].mxu0
        %1628 = vmatprep.mubr.f32.mxu0 0.0
        %1629 = vmatmul.mubr.f32.gmra.mrb[0].mxu0 %v1287
        %v1630 = vpop.f32.mrb[0].mxu0
        %v1631 = vadd.f32 %v1053, %v1630
        %v1632 = vpop.f32.mrb[0].mxu0
        %1633 = vmatprep.mubr.f32.mxu0 0.0
        %1634 = vmatmul.mubr.f32.gmra.mrb[0].mxu0 %v1290
        %v1635 = vpop.f32.mrb[0].mxu0
        %v1636 = vadd.f32 %v1058, %v1635
        %v1637 = vpop.f32.mrb[0].mxu0
        %1638 = vmatprep.mubr.f32.mxu0 0.0
        %1639 = vmatmul.mubr.f32.gmra.mrb[0].mxu0 %v1293
        %v1640 = vpop.f32.mrb[0].mxu0
        %v1641 = vadd.f32 %v1063, %v1640
        %v1642 = vpop.f32.mrb[0].mxu0
        %1643 = vmatprep.mubr.f32.mxu0 0.0
        %1644 = vmatmul.mubr.f32.gmra.mrb[0].mxu0 %v1296
        %v1645 = vpop.f32.mrb[0].mxu0
        %v1646 = vadd.f32 %v1068, %v1645
        %v1647 = vpop.f32.mrb[0].mxu0
        %1648 = vmatprep.mubr.f32.mxu0 0.0
        %1649 = vmatmul.mubr.f32.gmra.mrb[0].mxu0 %v1299
        %v1650 = vpop.f32.mrb[0].mxu0
        %v1651 = vadd.f32 %v1073, %v1650
        %v1652 = vpop.f32.mrb[0].mxu0
        %1653 = vmatprep.mubr.f32.mxu0 0.0
        %1654 = vmatmul.mubr.f32.gmra.mrb[0].mxu0 %v1302
        %v1655 = vpop.f32.mrb[0].mxu0
        %v1656 = vadd.f32 %v1078, %v1655
        %v1657 = vpop.f32.mrb[0].mxu0
        %1658 = vmatprep.mubr.f32.mxu0 0.0
        %1659 = vmatmul.mubr.f32.gmra.mrb[0].mxu0 %v1305
        %v1660 = vpop.f32.mrb[0].mxu0
        %v1661 = vadd.f32 %v1083, %v1660
        %v1662 = vpop.f32.mrb[0].mxu0
        %1663 = vmatprep.mubr.f32.mxu0 0.0
        %1664 = vmatmul.mubr.f32.gmra.mrb[0].mxu0 %v1308
        %v1665 = vpop.f32.mrb[0].mxu0
        %v1666 = vadd.f32 %v1088, %v1665
        %v1667 = vpop.f32.mrb[0].mxu0
        %1668 = vmatprep.mubr.f32.mxu0 0.0
        %1669 = vmatmul.mubr.f32.gmra.mrb[0].mxu0 %v1311
        %v1670 = vpop.f32.mrb[0].mxu0
        %v1671 = vadd.f32 %v1093, %v1670
        %v1672 = vpop.f32.mrb[0].mxu0
        %1673 = vmatprep.mubr.f32.mxu0 0.0
        %1674 = vmatmul.mubr.f32.gmra.mrb[0].mxu0 %v1314
        %v1675 = vpop.f32.mrb[0].mxu0
        %v1676 = vadd.f32 %v1098, %v1675
        %v1677 = vpop.f32.mrb[0].mxu0
        %1678 = vmatprep.mubr.f32.mxu0 0.0
        %1679 = vmatmul.mubr.f32.gmra.mrb[0].mxu0 %v1317
        %v1680 = vpop.f32.mrb[0].mxu0
        %v1681 = vadd.f32 %v1103, %v1680
        %v1682 = vpop.f32.mrb[0].mxu0
        %1683 = vmatprep.mubr.f32.mxu0 0.0
        %1684 = vmatmul.mubr.f32.gmra.mrb[0].mxu0 %v1320
        %v1685 = vpop.f32.mrb[0].mxu0
        %v1686 = vadd.f32 %v1108, %v1685
        %v1687 = vpop.f32.mrb[0].mxu0
        %1688 = vmatprep.mubr.f32.mxu0 0.0
        %1689 = vmatmul.mubr.f32.gmra.mrb[0].mxu0 %v1323
        %v1690 = vpop.f32.mrb[0].mxu0
        %v1691 = vadd.f32 %v1113, %v1690
        %v1692 = vpop.f32.mrb[0].mxu0
        %1693 = vmatprep.mubr.f32.mxu0 0.0
        %1694 = vmatmul.mubr.f32.gmra.mrb[0].mxu0 %v1326
        %v1695 = vpop.f32.mrb[0].mxu0
        %v1696 = vadd.f32 %v1118, %v1695
        %v1697 = vpop.f32.mrb[0].mxu0
        %1698 = vmatprep.mubr.f32.mxu0 0.0
        %1699 = vmatmul.mubr.f32.gmra.mrb[0].mxu0 %v1329
        %v1700 = vpop.f32.mrb[0].mxu0
        %v1701 = vadd.f32 %v1123, %v1700
        %v1702 = vpop.f32.mrb[0].mxu0
        %1703 = vmatprep.mubr.f32.mxu0 0.0
        %1704 = vmatmul.mubr.f32.gmra.mrb[0].mxu0 %v1332
        %v1705 = vpop.f32.mrb[0].mxu0
        %v1706 = vadd.f32 %v1128, %v1705
        %v1707 = vpop.f32.mrb[0].mxu0
        %1708 = vmatprep.mubr.f32.mxu0 0.0
        %1709 = vmatmul.mubr.f32.gmra.mrb[0].mxu0 %v1335
        %v1710 = vpop.f32.mrb[0].mxu0
        %v1711 = vadd.f32 %v1133, %v1710
        %v1712 = vpop.f32.mrb[0].mxu0
        %1713 = vmatprep.mubr.f32.mxu0 0.0
        %1714 = vmatmul.mubr.f32.gmra.mrb[0].mxu0 %v1338
        %v1715 = vpop.f32.mrb[0].mxu0
        %v1716 = vadd.f32 %v1138, %v1715
        %v1717 = vpop.f32.mrb[0].mxu0
        %1718 = vmatprep.mubr.f32.mxu0 0.0
        %1719 = vmatmul.mubr.f32.gmra.mrb[0].mxu0 %v1341
        %v1720 = vpop.f32.mrb[0].mxu0
        %v1721 = vadd.f32 %v1143, %v1720
        %v1722 = vpop.f32.mrb[0].mxu0
        %1723 = vmatprep.mubr.f32.mxu0 0.0
        %1724 = vmatmul.mubr.f32.gmra.mrb[0].mxu0 %v1344
        %v1725 = vpop.f32.mrb[0].mxu0
        %v1726 = vadd.f32 %v1148, %v1725
        %v1727 = vpop.f32.mrb[0].mxu0
        %1728 = vmatprep.mubr.f32.mxu0 0.0
        %1729 = vmatmul.mubr.f32.gmra.mrb[0].mxu0 %v1347
        %v1730 = vpop.f32.mrb[0].mxu0
        %v1731 = vadd.f32 %v1153, %v1730
        %v1732 = vpop.f32.mrb[0].mxu0
        %1733 = vdwg.mxu0
        %v1734 = vld [vmem:[%s431] sm:$0xff]
        %v1735 = vld [vmem:[%s431 + $0x8] sm:$0xff]
        %v1736 = vld [vmem:[%s431 + $0x10] sm:$0xff]
        %v1737 = vld [vmem:[%s431 + $0x18] sm:$0xff]
        %v1738 = vld [vmem:[%s431 + $0x20] sm:$0xff]
        %v1739 = vld [vmem:[%s431 + $0x28] sm:$0xff]
        %v1740 = vld [vmem:[%s431 + $0x30] sm:$0xff]
        %v1741 = vld [vmem:[%s431 + $0x38] sm:$0xff]
        %v1742 = vld [vmem:[%s431 + $0x40] sm:$0xff]
        %v1743 = vld [vmem:[%s431 + $0x48] sm:$0xff]
        %v1744 = vld [vmem:[%s431 + $0x50] sm:$0xff]
        %v1745 = vld [vmem:[%s431 + $0x58] sm:$0xff]
        %v1746 = vld [vmem:[%s431 + $0x60] sm:$0xff]
        %v1747 = vld [vmem:[%s431 + $0x68] sm:$0xff]
        %v1748 = vld [vmem:[%s431 + $0x70] sm:$0xff]
        %v1749 = vld [vmem:[%s431 + $0x78] sm:$0xff]
        %v1750 = vld [vmem:[%s431 + $0x80] sm:$0xff]
        %v1751 = vld [vmem:[%s431 + $0x88] sm:$0xff]
        %v1752 = vld [vmem:[%s431 + $0x90] sm:$0xff]
        %v1753 = vld [vmem:[%s431 + $0x98] sm:$0xff]
        %v1754 = vld [vmem:[%s431 + $0xa0] sm:$0xff]
        %v1755 = vld [vmem:[%s431 + $0xa8] sm:$0xff]
        %v1756 = vld [vmem:[%s431 + $0xb0] sm:$0xff]
        %v1757 = vld [vmem:[%s431 + $0xb8] sm:$0xff]
        %v1758 = vld [vmem:[%s431 + $0xc0] sm:$0xff]
        %v1759 = vld [vmem:[%s431 + $0xc8] sm:$0xff]
        %v1760 = vld [vmem:[%s431 + $0xd0] sm:$0xff]
        %v1761 = vld [vmem:[%s431 + $0xd8] sm:$0xff]
        %v1762 = vld [vmem:[%s431 + $0xe0] sm:$0xff]
        %v1763 = vld [vmem:[%s431 + $0xe8] sm:$0xff]
        %v1764 = vld [vmem:[%s431 + $0xf0] sm:$0xff]
        %v1765 = vld [vmem:[%s431 + $0xf8] sm:$0xff]
        %v1766 = vld [vmem:[%s431 + $0x100] sm:$0xff]
        %v1767 = vld [vmem:[%s431 + $0x108] sm:$0xff]
        %v1768 = vld [vmem:[%s431 + $0x110] sm:$0xff]
        %v1769 = vld [vmem:[%s431 + $0x118] sm:$0xff]
        %v1770 = vld [vmem:[%s431 + $0x120] sm:$0xff]
        %v1771 = vld [vmem:[%s431 + $0x128] sm:$0xff]
        %v1772 = vld [vmem:[%s431 + $0x130] sm:$0xff]
        %v1773 = vld [vmem:[%s431 + $0x138] sm:$0xff]
        %v1774 = vld [vmem:[%s431 + $0x140] sm:$0xff]
        %v1775 = vld [vmem:[%s431 + $0x148] sm:$0xff]
        %v1776 = vld [vmem:[%s431 + $0x150] sm:$0xff]
        %v1777 = vld [vmem:[%s431 + $0x158] sm:$0xff]
        %v1778 = vld [vmem:[%s431 + $0x160] sm:$0xff]
        %v1779 = vld [vmem:[%s431 + $0x168] sm:$0xff]
        %v1780 = vld [vmem:[%s431 + $0x170] sm:$0xff]
        %v1781 = vld [vmem:[%s431 + $0x178] sm:$0xff]
        %v1782 = vld [vmem:[%s431 + $0x180] sm:$0xff]
        %v1783 = vld [vmem:[%s431 + $0x188] sm:$0xff]
        %v1784 = vld [vmem:[%s431 + $0x190] sm:$0xff]
        %v1785 = vld [vmem:[%s431 + $0x198] sm:$0xff]
        %v1786 = vld [vmem:[%s431 + $0x1a0] sm:$0xff]
        %v1787 = vld [vmem:[%s431 + $0x1a8] sm:$0xff]
        %v1788 = vld [vmem:[%s431 + $0x1b0] sm:$0xff]
        %v1789 = vld [vmem:[%s431 + $0x1b8] sm:$0xff]
        %v1790 = vld [vmem:[%s431 + $0x1c0] sm:$0xff]
        %v1791 = vld [vmem:[%s431 + $0x1c8] sm:$0xff]
        %v1792 = vld [vmem:[%s431 + $0x1d0] sm:$0xff]
        %v1793 = vld [vmem:[%s431 + $0x1d8] sm:$0xff]
        %v1794 = vld [vmem:[%s431 + $0x1e0] sm:$0xff]
        %v1795 = vld [vmem:[%s431 + $0x1e8] sm:$0xff]
        %v1796 = vld [vmem:[%s431 + $0x1f0] sm:$0xff]
        %v1797 = vld [vmem:[%s431 + $0x1f8] sm:$0xff]
        %v1798 = vld [vmem:[%s5] sm:$0x3f]
        %vm1799 = vcmask 48128
        %v1801 = vsel %vm1799, %v1734, 0
        %v1804 = vsel %vm1799, %v1735, 0
        %v1807 = vsel %vm1799, %v1736, 0
        %v1810 = vsel %vm1799, %v1737, 0
        %v1813 = vsel %vm1799, %v1738, 0
        %v1816 = vsel %vm1799, %v1739, 0
        %v1819 = vsel %vm1799, %v1740, 0
        %v1822 = vsel %vm1799, %v1741, 0
        %v1825 = vsel %vm1799, %v1742, 0
        %v1828 = vsel %vm1799, %v1743, 0
        %v1831 = vsel %vm1799, %v1744, 0
        %v1834 = vsel %vm1799, %v1745, 0
        %v1837 = vsel %vm1799, %v1746, 0
        %v1840 = vsel %vm1799, %v1747, 0
        %v1843 = vsel %vm1799, %v1748, 0
        %v1846 = vsel %vm1799, %v1749, 0
        %v1849 = vsel %vm1799, %v1750, 0
        %v1852 = vsel %vm1799, %v1751, 0
        %v1855 = vsel %vm1799, %v1752, 0
        %v1858 = vsel %vm1799, %v1753, 0
        %v1861 = vsel %vm1799, %v1754, 0
        %v1864 = vsel %vm1799, %v1755, 0
        %v1867 = vsel %vm1799, %v1756, 0
        %v1870 = vsel %vm1799, %v1757, 0
        %v1873 = vsel %vm1799, %v1758, 0
        %v1876 = vsel %vm1799, %v1759, 0
        %v1879 = vsel %vm1799, %v1760, 0
        %v1882 = vsel %vm1799, %v1761, 0
        %v1885 = vsel %vm1799, %v1762, 0
        %v1888 = vsel %vm1799, %v1763, 0
        %v1891 = vsel %vm1799, %v1764, 0
        %v1894 = vsel %vm1799, %v1765, 0
        %v1897 = vsel %vm1799, %v1766, 0
        %v1900 = vsel %vm1799, %v1767, 0
        %v1903 = vsel %vm1799, %v1768, 0
        %v1906 = vsel %vm1799, %v1769, 0
        %v1909 = vsel %vm1799, %v1770, 0
        %v1912 = vsel %vm1799, %v1771, 0
        %v1915 = vsel %vm1799, %v1772, 0
        %v1918 = vsel %vm1799, %v1773, 0
        %v1921 = vsel %vm1799, %v1774, 0
        %v1924 = vsel %vm1799, %v1775, 0
        %v1927 = vsel %vm1799, %v1776, 0
        %v1930 = vsel %vm1799, %v1777, 0
        %v1933 = vsel %vm1799, %v1778, 0
        %v1936 = vsel %vm1799, %v1779, 0
        %v1939 = vsel %vm1799, %v1780, 0
        %v1942 = vsel %vm1799, %v1781, 0
        %v1945 = vsel %vm1799, %v1782, 0
        %v1948 = vsel %vm1799, %v1783, 0
        %v1951 = vsel %vm1799, %v1784, 0
        %v1954 = vsel %vm1799, %v1785, 0
        %v1957 = vsel %vm1799, %v1786, 0
        %v1960 = vsel %vm1799, %v1787, 0
        %v1963 = vsel %vm1799, %v1788, 0
        %v1966 = vsel %vm1799, %v1789, 0
        %v1969 = vsel %vm1799, %v1790, 0
        %v1972 = vsel %vm1799, %v1791, 0
        %v1975 = vsel %vm1799, %v1792, 0
        %v1978 = vsel %vm1799, %v1793, 0
        %v1981 = vsel %vm1799, %v1794, 0
        %v1984 = vsel %vm1799, %v1795, 0
        %v1987 = vsel %vm1799, %v1796, 0
        %v1990 = vsel %vm1799, %v1797, 0
        %vm1992 = vcmask 1045504
        %v1994 = vsel %vm1992, %v1798, 0
        %1996 = vmatprep.subr.mxu0 0.0
        %1997 = vmatpush1.msra.mxu0 %v1994
        %1998 = vmatprep.subr.mxu0 0.0
        %1999 = vmatpush1.msra.mxu0 0.0
        %2000 = vmatprep.subr.mxu0 0.0
        %2001 = vmatpush1.msra.mxu0 0.0
        %2002 = vmatprep.subr.mxu0 0.0
        %2003 = vmatpush1.msra.mxu0 0.0
        %2004 = vmatprep.subr.mxu0 0.0
        %2005 = vmatpush1.msra.mxu0 0.0
        %2006 = vmatprep.subr.mxu0 0.0
        %2007 = vmatpush1.msra.mxu0 0.0
        %2008 = vmatprep.subr.mxu0 0.0
        %2009 = vmatpush1.msra.mxu0 0.0
        %2010 = vmatprep.subr.mxu0 0.0
        %2011 = vmatpush1.msra.mxu0 0.0
        %2012 = vmatprep.subr.mxu0 0.0
        %2013 = vmatpush1.msra.mxu0 0.0
        %2014 = vmatprep.subr.mxu0 0.0
        %2015 = vmatpush1.msra.mxu0 0.0
        %2016 = vmatprep.subr.mxu0 0.0
        %2017 = vmatpush1.msra.mxu0 0.0
        %2018 = vmatprep.subr.mxu0 0.0
        %2019 = vmatpush1.msra.mxu0 0.0
        %2020 = vmatprep.subr.mxu0 0.0
        %2021 = vmatpush1.msra.mxu0 0.0
        %2022 = vmatprep.subr.mxu0 0.0
        %2023 = vmatpush1.msra.mxu0 0.0
        %2024 = vmatprep.subr.mxu0 0.0
        %2025 = vmatpush1.msra.mxu0 0.0
        %2026 = vmatprep.subr.mxu0 0.0
        %2027 = vmatpush1.msra.mxu0 0.0
        %2028 = vmatprep.subr.mxu0 0.0
        %2029 = vmatpush1.msra.mxu0 0.0
        %2030 = vmatprep.subr.mxu0 0.0
        %2031 = vmatpush1.msra.mxu0 0.0
        %2032 = vmatprep.subr.mxu0 0.0
        %2033 = vmatpush1.msra.mxu0 0.0
        %2034 = vmatprep.subr.mxu0 0.0
        %2035 = vmatpush1.msra.mxu0 0.0
        %2036 = vmatprep.subr.mxu0 0.0
        %2037 = vmatpush1.msra.mxu0 0.0
        %2038 = vmatprep.subr.mxu0 0.0
        %2039 = vmatpush1.msra.mxu0 0.0
        %2040 = vmatprep.subr.mxu0 0.0
        %2041 = vmatpush1.msra.mxu0 0.0
        %2042 = vmatprep.subr.mxu0 0.0
        %2043 = vmatpush1.msra.mxu0 0.0
        %2044 = vmatprep.subr.mxu0 0.0
        %2045 = vmatpush1.msra.mxu0 0.0
        %2046 = vmatprep.subr.mxu0 0.0
        %2047 = vmatpush1.msra.mxu0 0.0
        %2048 = vmatprep.subr.mxu0 0.0
        %2049 = vmatpush1.msra.mxu0 0.0
        %2050 = vmatprep.subr.mxu0 0.0
        %2051 = vmatpush1.msra.mxu0 0.0
        %2052 = vmatprep.subr.mxu0 0.0
        %2053 = vmatpush1.msra.mxu0 0.0
        %2054 = vmatprep.subr.mxu0 0.0
        %2055 = vmatpush1.msra.mxu0 0.0
        %2056 = vmatprep.subr.mxu0 0.0
        %2057 = vmatpush1.msra.mxu0 0.0
        %2058 = vmatprep.subr.mxu0 0.0
        %2059 = vmatpush1.msra.mxu0 0.0
        %2060 = vmatprep.mubr.f32.mxu0 0.0
        %2061 = vmatmul.mubr.f32.gmra.mrb[0].mxu0 %v1801
        %v2062 = vpop.f32.mrb[0].mxu0
        %v2063 = vadd.f32 0.0, %v2062
        %v2064 = vpop.f32.mrb[0].mxu0
        %2065 = vmatprep.mubr.f32.mxu0 0.0
        %2066 = vmatmul.mubr.f32.gmra.mrb[0].mxu0 %v1804
        %v2067 = vpop.f32.mrb[0].mxu0
        %v2068 = vadd.f32 0.0, %v2067
        %v2069 = vpop.f32.mrb[0].mxu0
        %2070 = vmatprep.mubr.f32.mxu0 0.0
        %2071 = vmatmul.mubr.f32.gmra.mrb[0].mxu0 %v1807
        %v2072 = vpop.f32.mrb[0].mxu0
        %v2073 = vadd.f32 0.0, %v2072
        %v2074 = vpop.f32.mrb[0].mxu0
        %2075 = vmatprep.mubr.f32.mxu0 0.0
        %2076 = vmatmul.mubr.f32.gmra.mrb[0].mxu0 %v1810
        %v2077 = vpop.f32.mrb[0].mxu0
        %v2078 = vadd.f32 0.0, %v2077
        %v2079 = vpop.f32.mrb[0].mxu0
        %2080 = vmatprep.mubr.f32.mxu0 0.0
        %2081 = vmatmul.mubr.f32.gmra.mrb[0].mxu0 %v1813
        %v2082 = vpop.f32.mrb[0].mxu0
        %v2083 = vadd.f32 0.0, %v2082
        %v2084 = vpop.f32.mrb[0].mxu0
        %2085 = vmatprep.mubr.f32.mxu0 0.0
        %2086 = vmatmul.mubr.f32.gmra.mrb[0].mxu0 %v1816
        %v2087 = vpop.f32.mrb[0].mxu0
        %v2088 = vadd.f32 0.0, %v2087
        %v2089 = vpop.f32.mrb[0].mxu0
        %2090 = vmatprep.mubr.f32.mxu0 0.0
        %2091 = vmatmul.mubr.f32.gmra.mrb[0].mxu0 %v1819
        %v2092 = vpop.f32.mrb[0].mxu0
        %v2093 = vadd.f32 0.0, %v2092
        %v2094 = vpop.f32.mrb[0].mxu0
        %2095 = vmatprep.mubr.f32.mxu0 0.0
        %2096 = vmatmul.mubr.f32.gmra.mrb[0].mxu0 %v1822
        %v2097 = vpop.f32.mrb[0].mxu0
        %v2098 = vadd.f32 0.0, %v2097
        %v2099 = vpop.f32.mrb[0].mxu0
        %2100 = vmatprep.mubr.f32.mxu0 0.0
        %2101 = vmatmul.mubr.f32.gmra.mrb[0].mxu0 %v1825
        %v2102 = vpop.f32.mrb[0].mxu0
        %v2103 = vadd.f32 0.0, %v2102
        %v2104 = vpop.f32.mrb[0].mxu0
        %2105 = vmatprep.mubr.f32.mxu0 0.0
        %2106 = vmatmul.mubr.f32.gmra.mrb[0].mxu0 %v1828
        %v2107 = vpop.f32.mrb[0].mxu0
        %v2108 = vadd.f32 0.0, %v2107
        %v2109 = vpop.f32.mrb[0].mxu0
        %2110 = vmatprep.mubr.f32.mxu0 0.0
        %2111 = vmatmul.mubr.f32.gmra.mrb[0].mxu0 %v1831
        %v2112 = vpop.f32.mrb[0].mxu0
        %v2113 = vadd.f32 0.0, %v2112
        %v2114 = vpop.f32.mrb[0].mxu0
        %2115 = vmatprep.mubr.f32.mxu0 0.0
        %2116 = vmatmul.mubr.f32.gmra.mrb[0].mxu0 %v1834
        %v2117 = vpop.f32.mrb[0].mxu0
        %v2118 = vadd.f32 0.0, %v2117
        %v2119 = vpop.f32.mrb[0].mxu0
        %2120 = vmatprep.mubr.f32.mxu0 0.0
        %2121 = vmatmul.mubr.f32.gmra.mrb[0].mxu0 %v1837
        %v2122 = vpop.f32.mrb[0].mxu0
        %v2123 = vadd.f32 0.0, %v2122
        %v2124 = vpop.f32.mrb[0].mxu0
        %2125 = vmatprep.mubr.f32.mxu0 0.0
        %2126 = vmatmul.mubr.f32.gmra.mrb[0].mxu0 %v1840
        %v2127 = vpop.f32.mrb[0].mxu0
        %v2128 = vadd.f32 0.0, %v2127
        %v2129 = vpop.f32.mrb[0].mxu0
        %2130 = vmatprep.mubr.f32.mxu0 0.0
        %2131 = vmatmul.mubr.f32.gmra.mrb[0].mxu0 %v1843
        %v2132 = vpop.f32.mrb[0].mxu0
        %v2133 = vadd.f32 0.0, %v2132
        %v2134 = vpop.f32.mrb[0].mxu0
        %2135 = vmatprep.mubr.f32.mxu0 0.0
        %2136 = vmatmul.mubr.f32.gmra.mrb[0].mxu0 %v1846
        %v2137 = vpop.f32.mrb[0].mxu0
        %v2138 = vadd.f32 0.0, %v2137
        %v2139 = vpop.f32.mrb[0].mxu0
        %2140 = vmatprep.mubr.f32.mxu0 0.0
        %2141 = vmatmul.mubr.f32.gmra.mrb[0].mxu0 %v1849
        %v2142 = vpop.f32.mrb[0].mxu0
        %v2143 = vadd.f32 0.0, %v2142
        %v2144 = vpop.f32.mrb[0].mxu0
        %2145 = vmatprep.mubr.f32.mxu0 0.0
        %2146 = vmatmul.mubr.f32.gmra.mrb[0].mxu0 %v1852
        %v2147 = vpop.f32.mrb[0].mxu0
        %v2148 = vadd.f32 0.0, %v2147
        %v2149 = vpop.f32.mrb[0].mxu0
        %2150 = vmatprep.mubr.f32.mxu0 0.0
        %2151 = vmatmul.mubr.f32.gmra.mrb[0].mxu0 %v1855
        %v2152 = vpop.f32.mrb[0].mxu0
        %v2153 = vadd.f32 0.0, %v2152
        %v2154 = vpop.f32.mrb[0].mxu0
        %2155 = vmatprep.mubr.f32.mxu0 0.0
        %2156 = vmatmul.mubr.f32.gmra.mrb[0].mxu0 %v1858
        %v2157 = vpop.f32.mrb[0].mxu0
        %v2158 = vadd.f32 0.0, %v2157
        %v2159 = vpop.f32.mrb[0].mxu0
        %2160 = vmatprep.mubr.f32.mxu0 0.0
        %2161 = vmatmul.mubr.f32.gmra.mrb[0].mxu0 %v1861
        %v2162 = vpop.f32.mrb[0].mxu0
        %v2163 = vadd.f32 0.0, %v2162
        %v2164 = vpop.f32.mrb[0].mxu0
        %2165 = vmatprep.mubr.f32.mxu0 0.0
        %2166 = vmatmul.mubr.f32.gmra.mrb[0].mxu0 %v1864
        %v2167 = vpop.f32.mrb[0].mxu0
        %v2168 = vadd.f32 0.0, %v2167
        %v2169 = vpop.f32.mrb[0].mxu0
        %2170 = vmatprep.mubr.f32.mxu0 0.0
        %2171 = vmatmul.mubr.f32.gmra.mrb[0].mxu0 %v1867
        %v2172 = vpop.f32.mrb[0].mxu0
        %v2173 = vadd.f32 0.0, %v2172
        %v2174 = vpop.f32.mrb[0].mxu0
        %2175 = vmatprep.mubr.f32.mxu0 0.0
        %2176 = vmatmul.mubr.f32.gmra.mrb[0].mxu0 %v1870
        %v2177 = vpop.f32.mrb[0].mxu0
        %v2178 = vadd.f32 0.0, %v2177
        %v2179 = vpop.f32.mrb[0].mxu0
        %2180 = vmatprep.mubr.f32.mxu0 0.0
        %2181 = vmatmul.mubr.f32.gmra.mrb[0].mxu0 %v1873
        %v2182 = vpop.f32.mrb[0].mxu0
        %v2183 = vadd.f32 0.0, %v2182
        %v2184 = vpop.f32.mrb[0].mxu0
        %2185 = vmatprep.mubr.f32.mxu0 0.0
        %2186 = vmatmul.mubr.f32.gmra.mrb[0].mxu0 %v1876
        %v2187 = vpop.f32.mrb[0].mxu0
        %v2188 = vadd.f32 0.0, %v2187
        %v2189 = vpop.f32.mrb[0].mxu0
        %2190 = vmatprep.mubr.f32.mxu0 0.0
        %2191 = vmatmul.mubr.f32.gmra.mrb[0].mxu0 %v1879
        %v2192 = vpop.f32.mrb[0].mxu0
        %v2193 = vadd.f32 0.0, %v2192
        %v2194 = vpop.f32.mrb[0].mxu0
        %2195 = vmatprep.mubr.f32.mxu0 0.0
        %2196 = vmatmul.mubr.f32.gmra.mrb[0].mxu0 %v1882
        %v2197 = vpop.f32.mrb[0].mxu0
        %v2198 = vadd.f32 0.0, %v2197
        %v2199 = vpop.f32.mrb[0].mxu0
        %2200 = vmatprep.mubr.f32.mxu0 0.0
        %2201 = vmatmul.mubr.f32.gmra.mrb[0].mxu0 %v1885
        %v2202 = vpop.f32.mrb[0].mxu0
        %v2203 = vadd.f32 0.0, %v2202
        %v2204 = vpop.f32.mrb[0].mxu0
        %2205 = vmatprep.mubr.f32.mxu0 0.0
        %2206 = vmatmul.mubr.f32.gmra.mrb[0].mxu0 %v1888
        %v2207 = vpop.f32.mrb[0].mxu0
        %v2208 = vadd.f32 0.0, %v2207
        %v2209 = vpop.f32.mrb[0].mxu0
        %2210 = vmatprep.mubr.f32.mxu0 0.0
        %2211 = vmatmul.mubr.f32.gmra.mrb[0].mxu0 %v1891
        %v2212 = vpop.f32.mrb[0].mxu0
        %v2213 = vadd.f32 0.0, %v2212
        %v2214 = vpop.f32.mrb[0].mxu0
        %2215 = vmatprep.mubr.f32.mxu0 0.0
        %2216 = vmatmul.mubr.f32.gmra.mrb[0].mxu0 %v1894
        %v2217 = vpop.f32.mrb[0].mxu0
        %v2218 = vadd.f32 0.0, %v2217
        %v2219 = vpop.f32.mrb[0].mxu0
        %2220 = vmatprep.mubr.f32.mxu0 0.0
        %2221 = vmatmul.mubr.f32.gmra.mrb[0].mxu0 %v1897
        %v2222 = vpop.f32.mrb[0].mxu0
        %v2223 = vadd.f32 0.0, %v2222
        %v2224 = vpop.f32.mrb[0].mxu0
        %2225 = vmatprep.mubr.f32.mxu0 0.0
        %2226 = vmatmul.mubr.f32.gmra.mrb[0].mxu0 %v1900
        %v2227 = vpop.f32.mrb[0].mxu0
        %v2228 = vadd.f32 0.0, %v2227
        %v2229 = vpop.f32.mrb[0].mxu0
        %2230 = vmatprep.mubr.f32.mxu0 0.0
        %2231 = vmatmul.mubr.f32.gmra.mrb[0].mxu0 %v1903
        %v2232 = vpop.f32.mrb[0].mxu0
        %v2233 = vadd.f32 0.0, %v2232
        %v2234 = vpop.f32.mrb[0].mxu0
        %2235 = vmatprep.mubr.f32.mxu0 0.0
        %2236 = vmatmul.mubr.f32.gmra.mrb[0].mxu0 %v1906
        %v2237 = vpop.f32.mrb[0].mxu0
        %v2238 = vadd.f32 0.0, %v2237
        %v2239 = vpop.f32.mrb[0].mxu0
        %2240 = vmatprep.mubr.f32.mxu0 0.0
        %2241 = vmatmul.mubr.f32.gmra.mrb[0].mxu0 %v1909
        %v2242 = vpop.f32.mrb[0].mxu0
        %v2243 = vadd.f32 0.0, %v2242
        %v2244 = vpop.f32.mrb[0].mxu0
        %2245 = vmatprep.mubr.f32.mxu0 0.0
        %2246 = vmatmul.mubr.f32.gmra.mrb[0].mxu0 %v1912
        %v2247 = vpop.f32.mrb[0].mxu0
        %v2248 = vadd.f32 0.0, %v2247
        %v2249 = vpop.f32.mrb[0].mxu0
        %2250 = vmatprep.mubr.f32.mxu0 0.0
        %2251 = vmatmul.mubr.f32.gmra.mrb[0].mxu0 %v1915
        %v2252 = vpop.f32.mrb[0].mxu0
        %v2253 = vadd.f32 0.0, %v2252
        %v2254 = vpop.f32.mrb[0].mxu0
        %2255 = vmatprep.mubr.f32.mxu0 0.0
        %2256 = vmatmul.mubr.f32.gmra.mrb[0].mxu0 %v1918
        %v2257 = vpop.f32.mrb[0].mxu0
        %v2258 = vadd.f32 0.0, %v2257
        %v2259 = vpop.f32.mrb[0].mxu0
        %2260 = vmatprep.mubr.f32.mxu0 0.0
        %2261 = vmatmul.mubr.f32.gmra.mrb[0].mxu0 %v1921
        %v2262 = vpop.f32.mrb[0].mxu0
        %v2263 = vadd.f32 0.0, %v2262
        %v2264 = vpop.f32.mrb[0].mxu0
        %2265 = vmatprep.mubr.f32.mxu0 0.0
        %2266 = vmatmul.mubr.f32.gmra.mrb[0].mxu0 %v1924
        %v2267 = vpop.f32.mrb[0].mxu0
        %v2268 = vadd.f32 0.0, %v2267
        %v2269 = vpop.f32.mrb[0].mxu0
        %2270 = vmatprep.mubr.f32.mxu0 0.0
        %2271 = vmatmul.mubr.f32.gmra.mrb[0].mxu0 %v1927
        %v2272 = vpop.f32.mrb[0].mxu0
        %v2273 = vadd.f32 0.0, %v2272
        %v2274 = vpop.f32.mrb[0].mxu0
        %2275 = vmatprep.mubr.f32.mxu0 0.0
        %2276 = vmatmul.mubr.f32.gmra.mrb[0].mxu0 %v1930
        %v2277 = vpop.f32.mrb[0].mxu0
        %v2278 = vadd.f32 0.0, %v2277
        %v2279 = vpop.f32.mrb[0].mxu0
        %2280 = vmatprep.mubr.f32.mxu0 0.0
        %2281 = vmatmul.mubr.f32.gmra.mrb[0].mxu0 %v1933
        %v2282 = vpop.f32.mrb[0].mxu0
        %v2283 = vadd.f32 0.0, %v2282
        %v2284 = vpop.f32.mrb[0].mxu0
        %2285 = vmatprep.mubr.f32.mxu0 0.0
        %2286 = vmatmul.mubr.f32.gmra.mrb[0].mxu0 %v1936
        %v2287 = vpop.f32.mrb[0].mxu0
        %v2288 = vadd.f32 0.0, %v2287
        %v2289 = vpop.f32.mrb[0].mxu0
        %2290 = vmatprep.mubr.f32.mxu0 0.0
        %2291 = vmatmul.mubr.f32.gmra.mrb[0].mxu0 %v1939
        %v2292 = vpop.f32.mrb[0].mxu0
        %v2293 = vadd.f32 0.0, %v2292
        %v2294 = vpop.f32.mrb[0].mxu0
        %2295 = vmatprep.mubr.f32.mxu0 0.0
        %2296 = vmatmul.mubr.f32.gmra.mrb[0].mxu0 %v1942
        %v2297 = vpop.f32.mrb[0].mxu0
        %v2298 = vadd.f32 0.0, %v2297
        %v2299 = vpop.f32.mrb[0].mxu0
        %2300 = vmatprep.mubr.f32.mxu0 0.0
        %2301 = vmatmul.mubr.f32.gmra.mrb[0].mxu0 %v1945
        %v2302 = vpop.f32.mrb[0].mxu0
        %v2303 = vadd.f32 0.0, %v2302
        %v2304 = vpop.f32.mrb[0].mxu0
        %2305 = vmatprep.mubr.f32.mxu0 0.0
        %2306 = vmatmul.mubr.f32.gmra.mrb[0].mxu0 %v1948
        %v2307 = vpop.f32.mrb[0].mxu0
        %v2308 = vadd.f32 0.0, %v2307
        %v2309 = vpop.f32.mrb[0].mxu0
        %2310 = vmatprep.mubr.f32.mxu0 0.0
        %2311 = vmatmul.mubr.f32.gmra.mrb[0].mxu0 %v1951
        %v2312 = vpop.f32.mrb[0].mxu0
        %v2313 = vadd.f32 0.0, %v2312
        %v2314 = vpop.f32.mrb[0].mxu0
        %2315 = vmatprep.mubr.f32.mxu0 0.0
        %2316 = vmatmul.mubr.f32.gmra.mrb[0].mxu0 %v1954
        %v2317 = vpop.f32.mrb[0].mxu0
        %v2318 = vadd.f32 0.0, %v2317
        %v2319 = vpop.f32.mrb[0].mxu0
        %2320 = vmatprep.mubr.f32.mxu0 0.0
        %2321 = vmatmul.mubr.f32.gmra.mrb[0].mxu0 %v1957
        %v2322 = vpop.f32.mrb[0].mxu0
        %v2323 = vadd.f32 0.0, %v2322
        %v2324 = vpop.f32.mrb[0].mxu0
        %2325 = vmatprep.mubr.f32.mxu0 0.0
        %2326 = vmatmul.mubr.f32.gmra.mrb[0].mxu0 %v1960
        %v2327 = vpop.f32.mrb[0].mxu0
        %v2328 = vadd.f32 0.0, %v2327
        %v2329 = vpop.f32.mrb[0].mxu0
        %2330 = vmatprep.mubr.f32.mxu0 0.0
        %2331 = vmatmul.mubr.f32.gmra.mrb[0].mxu0 %v1963
        %v2332 = vpop.f32.mrb[0].mxu0
        %v2333 = vadd.f32 0.0, %v2332
        %v2334 = vpop.f32.mrb[0].mxu0
        %2335 = vmatprep.mubr.f32.mxu0 0.0
        %2336 = vmatmul.mubr.f32.gmra.mrb[0].mxu0 %v1966
        %v2337 = vpop.f32.mrb[0].mxu0
        %v2338 = vadd.f32 0.0, %v2337
        %v2339 = vpop.f32.mrb[0].mxu0
        %2340 = vmatprep.mubr.f32.mxu0 0.0
        %2341 = vmatmul.mubr.f32.gmra.mrb[0].mxu0 %v1969
        %v2342 = vpop.f32.mrb[0].mxu0
        %v2343 = vadd.f32 0.0, %v2342
        %v2344 = vpop.f32.mrb[0].mxu0
        %2345 = vmatprep.mubr.f32.mxu0 0.0
        %2346 = vmatmul.mubr.f32.gmra.mrb[0].mxu0 %v1972
        %v2347 = vpop.f32.mrb[0].mxu0
        %v2348 = vadd.f32 0.0, %v2347
        %v2349 = vpop.f32.mrb[0].mxu0
        %2350 = vmatprep.mubr.f32.mxu0 0.0
        %2351 = vmatmul.mubr.f32.gmra.mrb[0].mxu0 %v1975
        %v2352 = vpop.f32.mrb[0].mxu0
        %v2353 = vadd.f32 0.0, %v2352
        %v2354 = vpop.f32.mrb[0].mxu0
        %2355 = vmatprep.mubr.f32.mxu0 0.0
        %2356 = vmatmul.mubr.f32.gmra.mrb[0].mxu0 %v1978
        %v2357 = vpop.f32.mrb[0].mxu0
        %v2358 = vadd.f32 0.0, %v2357
        %v2359 = vpop.f32.mrb[0].mxu0
        %2360 = vmatprep.mubr.f32.mxu0 0.0
        %2361 = vmatmul.mubr.f32.gmra.mrb[0].mxu0 %v1981
        %v2362 = vpop.f32.mrb[0].mxu0
        %v2363 = vadd.f32 0.0, %v2362
        %v2364 = vpop.f32.mrb[0].mxu0
        %2365 = vmatprep.mubr.f32.mxu0 0.0
        %2366 = vmatmul.mubr.f32.gmra.mrb[0].mxu0 %v1984
        %v2367 = vpop.f32.mrb[0].mxu0
        %v2368 = vadd.f32 0.0, %v2367
        %v2369 = vpop.f32.mrb[0].mxu0
        %2370 = vmatprep.mubr.f32.mxu0 0.0
        %2371 = vmatmul.mubr.f32.gmra.mrb[0].mxu0 %v1987
        %v2372 = vpop.f32.mrb[0].mxu0
        %v2373 = vadd.f32 0.0, %v2372
        %v2374 = vpop.f32.mrb[0].mxu0
        %2375 = vmatprep.mubr.f32.mxu0 0.0
        %2376 = vmatmul.mubr.f32.gmra.mrb[0].mxu0 %v1990
        %v2377 = vpop.f32.mrb[0].mxu0
        %v2378 = vadd.f32 0.0, %v2377
        %v2379 = vpop.f32.mrb[0].mxu0
        %2380 = vdwg.mxu0
        %v2381 = vadd.f32 %v1416, %v2063
        %v2382 = vadd.f32 %v1421, %v2068
        %v2383 = vadd.f32 %v1426, %v2073
        %v2384 = vadd.f32 %v1431, %v2078
        %v2385 = vadd.f32 %v1436, %v2083
        %v2386 = vadd.f32 %v1441, %v2088
        %v2387 = vadd.f32 %v1446, %v2093
        %v2388 = vadd.f32 %v1451, %v2098
        %v2389 = vadd.f32 %v1456, %v2103
        %v2390 = vadd.f32 %v1461, %v2108
        %v2391 = vadd.f32 %v1466, %v2113
        %v2392 = vadd.f32 %v1471, %v2118
        %v2393 = vadd.f32 %v1476, %v2123
        %v2394 = vadd.f32 %v1481, %v2128
        %v2395 = vadd.f32 %v1486, %v2133
        %v2396 = vadd.f32 %v1491, %v2138
        %v2397 = vadd.f32 %v1496, %v2143
        %v2398 = vadd.f32 %v1501, %v2148
        %v2399 = vadd.f32 %v1506, %v2153
        %v2400 = vadd.f32 %v1511, %v2158
        %v2401 = vadd.f32 %v1516, %v2163
        %v2402 = vadd.f32 %v1521, %v2168
        %v2403 = vadd.f32 %v1526, %v2173
        %v2404 = vadd.f32 %v1531, %v2178
        %v2405 = vadd.f32 %v1536, %v2183
        %v2406 = vadd.f32 %v1541, %v2188
        %v2407 = vadd.f32 %v1546, %v2193
        %v2408 = vadd.f32 %v1551, %v2198
        %v2409 = vadd.f32 %v1556, %v2203
        %v2410 = vadd.f32 %v1561, %v2208
        %v2411 = vadd.f32 %v1566, %v2213
        %v2412 = vadd.f32 %v1571, %v2218
        %v2413 = vadd.f32 %v1576, %v2223
        %v2414 = vadd.f32 %v1581, %v2228
        %v2415 = vadd.f32 %v1586, %v2233
        %v2416 = vadd.f32 %v1591, %v2238
        %v2417 = vadd.f32 %v1596, %v2243
        %v2418 = vadd.f32 %v1601, %v2248
        %v2419 = vadd.f32 %v1606, %v2253
        %v2420 = vadd.f32 %v1611, %v2258
        %v2421 = vadd.f32 %v1616, %v2263
        %v2422 = vadd.f32 %v1621, %v2268
        %v2423 = vadd.f32 %v1626, %v2273
        %v2424 = vadd.f32 %v1631, %v2278
        %v2425 = vadd.f32 %v1636, %v2283
        %v2426 = vadd.f32 %v1641, %v2288
        %v2427 = vadd.f32 %v1646, %v2293
        %v2428 = vadd.f32 %v1651, %v2298
        %v2429 = vadd.f32 %v1656, %v2303
        %v2430 = vadd.f32 %v1661, %v2308
        %v2431 = vadd.f32 %v1666, %v2313
        %v2432 = vadd.f32 %v1671, %v2318
        %v2433 = vadd.f32 %v1676, %v2323
        %v2434 = vadd.f32 %v1681, %v2328
        %v2435 = vadd.f32 %v1686, %v2333
        %v2436 = vadd.f32 %v1691, %v2338
        %v2437 = vadd.f32 %v1696, %v2343
        %v2438 = vadd.f32 %v1701, %v2348
        %v2439 = vadd.f32 %v1706, %v2353
        %v2440 = vadd.f32 %v1711, %v2358
        %v2441 = vadd.f32 %v1716, %v2363
        %v2442 = vadd.f32 %v1721, %v2368
        %v2443 = vadd.f32 %v1726, %v2373
        %v2444 = vadd.f32 %v1731, %v2378
        %v2445 = vld [vmem:[%s6] sm:$0x1]
        %v2447 = vlaneseq
        %v2448 = vshrl.u32 %v2447, 7
        %v2449 = vsub.s32 0, %v2448
        %v2450 = vrot.slane %v2445, %v2449
        %v2452 = vadd.f32 %v2381, %v2450
        %v2453 = vadd.f32 %v2382, %v2450
        %v2454 = vadd.f32 %v2383, %v2450
        %v2455 = vadd.f32 %v2384, %v2450
        %v2456 = vadd.f32 %v2385, %v2450
        %v2457 = vadd.f32 %v2386, %v2450
        %v2458 = vadd.f32 %v2387, %v2450
        %v2459 = vadd.f32 %v2388, %v2450
        %v2460 = vadd.f32 %v2389, %v2450
        %v2461 = vadd.f32 %v2390, %v2450
        %v2462 = vadd.f32 %v2391, %v2450
        %v2463 = vadd.f32 %v2392, %v2450
        %v2464 = vadd.f32 %v2393, %v2450
        %v2465 = vadd.f32 %v2394, %v2450
        %v2466 = vadd.f32 %v2395, %v2450
        %v2467 = vadd.f32 %v2396, %v2450
        %v2468 = vadd.f32 %v2397, %v2450
        %v2469 = vadd.f32 %v2398, %v2450
        %v2470 = vadd.f32 %v2399, %v2450
        %v2471 = vadd.f32 %v2400, %v2450
        %v2472 = vadd.f32 %v2401, %v2450
        %v2473 = vadd.f32 %v2402, %v2450
        %v2474 = vadd.f32 %v2403, %v2450
        %v2475 = vadd.f32 %v2404, %v2450
        %v2476 = vadd.f32 %v2405, %v2450
        %v2477 = vadd.f32 %v2406, %v2450
        %v2478 = vadd.f32 %v2407, %v2450
        %v2479 = vadd.f32 %v2408, %v2450
        %v2480 = vadd.f32 %v2409, %v2450
        %v2481 = vadd.f32 %v2410, %v2450
        %v2482 = vadd.f32 %v2411, %v2450
        %v2483 = vadd.f32 %v2412, %v2450
        %v2484 = vadd.f32 %v2413, %v2450
        %v2485 = vadd.f32 %v2414, %v2450
        %v2486 = vadd.f32 %v2415, %v2450
        %v2487 = vadd.f32 %v2416, %v2450
        %v2488 = vadd.f32 %v2417, %v2450
        %v2489 = vadd.f32 %v2418, %v2450
        %v2490 = vadd.f32 %v2419, %v2450
        %v2491 = vadd.f32 %v2420, %v2450
        %v2492 = vadd.f32 %v2421, %v2450
        %v2493 = vadd.f32 %v2422, %v2450
        %v2494 = vadd.f32 %v2423, %v2450
        %v2495 = vadd.f32 %v2424, %v2450
        %v2496 = vadd.f32 %v2425, %v2450
        %v2497 = vadd.f32 %v2426, %v2450
        %v2498 = vadd.f32 %v2427, %v2450
        %v2499 = vadd.f32 %v2428, %v2450
        %v2500 = vadd.f32 %v2429, %v2450
        %v2501 = vadd.f32 %v2430, %v2450
        %v2502 = vadd.f32 %v2431, %v2450
        %v2503 = vadd.f32 %v2432, %v2450
        %v2504 = vadd.f32 %v2433, %v2450
        %v2505 = vadd.f32 %v2434, %v2450
        %v2506 = vadd.f32 %v2435, %v2450
        %v2507 = vadd.f32 %v2436, %v2450
        %v2508 = vadd.f32 %v2437, %v2450
        %v2509 = vadd.f32 %v2438, %v2450
        %v2510 = vadd.f32 %v2439, %v2450
        %v2511 = vadd.f32 %v2440, %v2450
        %v2512 = vadd.f32 %v2441, %v2450
        %v2513 = vadd.f32 %v2442, %v2450
        %v2514 = vadd.f32 %v2443, %v2450
        %v2515 = vadd.f32 %v2444, %v2450
        %v2516 = vmax.f32 %v2452, 0.0
        %v2517 = vmax.f32 %v2453, 0.0
        %v2518 = vmax.f32 %v2454, 0.0
        %v2519 = vmax.f32 %v2455, 0.0
        %v2520 = vmax.f32 %v2456, 0.0
        %v2521 = vmax.f32 %v2457, 0.0
        %v2522 = vmax.f32 %v2458, 0.0
        %v2523 = vmax.f32 %v2459, 0.0
        %v2524 = vmax.f32 %v2460, 0.0
        %v2525 = vmax.f32 %v2461, 0.0
        %v2526 = vmax.f32 %v2462, 0.0
        %v2527 = vmax.f32 %v2463, 0.0
        %v2528 = vmax.f32 %v2464, 0.0
        %v2529 = vmax.f32 %v2465, 0.0
        %v2530 = vmax.f32 %v2466, 0.0
        %v2531 = vmax.f32 %v2467, 0.0
        %v2532 = vmax.f32 %v2468, 0.0
        %v2533 = vmax.f32 %v2469, 0.0
        %v2534 = vmax.f32 %v2470, 0.0
        %v2535 = vmax.f32 %v2471, 0.0
        %v2536 = vmax.f32 %v2472, 0.0
        %v2537 = vmax.f32 %v2473, 0.0
        %v2538 = vmax.f32 %v2474, 0.0
        %v2539 = vmax.f32 %v2475, 0.0
        %v2540 = vmax.f32 %v2476, 0.0
        %v2541 = vmax.f32 %v2477, 0.0
        %v2542 = vmax.f32 %v2478, 0.0
        %v2543 = vmax.f32 %v2479, 0.0
        %v2544 = vmax.f32 %v2480, 0.0
        %v2545 = vmax.f32 %v2481, 0.0
        %v2546 = vmax.f32 %v2482, 0.0
        %v2547 = vmax.f32 %v2483, 0.0
        %v2548 = vmax.f32 %v2484, 0.0
        %v2549 = vmax.f32 %v2485, 0.0
        %v2550 = vmax.f32 %v2486, 0.0
        %v2551 = vmax.f32 %v2487, 0.0
        %v2552 = vmax.f32 %v2488, 0.0
        %v2553 = vmax.f32 %v2489, 0.0
        %v2554 = vmax.f32 %v2490, 0.0
        %v2555 = vmax.f32 %v2491, 0.0
        %v2556 = vmax.f32 %v2492, 0.0
        %v2557 = vmax.f32 %v2493, 0.0
        %v2558 = vmax.f32 %v2494, 0.0
        %v2559 = vmax.f32 %v2495, 0.0
        %v2560 = vmax.f32 %v2496, 0.0
        %v2561 = vmax.f32 %v2497, 0.0
        %v2562 = vmax.f32 %v2498, 0.0
        %v2563 = vmax.f32 %v2499, 0.0
        %v2564 = vmax.f32 %v2500, 0.0
        %v2565 = vmax.f32 %v2501, 0.0
        %v2566 = vmax.f32 %v2502, 0.0
        %v2567 = vmax.f32 %v2503, 0.0
        %v2568 = vmax.f32 %v2504, 0.0
        %v2569 = vmax.f32 %v2505, 0.0
        %v2570 = vmax.f32 %v2506, 0.0
        %v2571 = vmax.f32 %v2507, 0.0
        %v2572 = vmax.f32 %v2508, 0.0
        %v2573 = vmax.f32 %v2509, 0.0
        %v2574 = vmax.f32 %v2510, 0.0
        %v2575 = vmax.f32 %v2511, 0.0
        %v2576 = vmax.f32 %v2512, 0.0
        %v2577 = vmax.f32 %v2513, 0.0
        %v2578 = vmax.f32 %v2514, 0.0
        %v2579 = vmax.f32 %v2515, 0.0
        %v2580 = vld [vmem:[%s7] sm:$0x3f]
        %v2581 = vld [vmem:[%s8] sm:$0x3f]
        %2583 = vset.pattern.permute.xlu0 0
        %2584 = vperm.xlu0 %2583, %v2581
        %v2585 = vpop.permute.xlu0 %2584
        %v2588 = vsel %vm1156, %v2580, 0
        %v2591 = vsel %vm1156, %v2516, 0
        %v2594 = vsel %vm1156, %v2517, 0
        %v2597 = vsel %vm1156, %v2518, 0
        %v2600 = vsel %vm1156, %v2519, 0
        %v2603 = vsel %vm1156, %v2520, 0
        %v2606 = vsel %vm1156, %v2521, 0
        %v2609 = vsel %vm1156, %v2522, 0
        %v2612 = vsel %vm1156, %v2523, 0
        %v2615 = vsel %vm1156, %v2524, 0
        %v2618 = vsel %vm1156, %v2525, 0
        %v2621 = vsel %vm1156, %v2526, 0
        %v2624 = vsel %vm1156, %v2527, 0
        %v2627 = vsel %vm1156, %v2528, 0
        %v2630 = vsel %vm1156, %v2529, 0
        %v2633 = vsel %vm1156, %v2530, 0
        %v2636 = vsel %vm1156, %v2531, 0
        %v2639 = vsel %vm1156, %v2532, 0
        %v2642 = vsel %vm1156, %v2533, 0
        %v2645 = vsel %vm1156, %v2534, 0
        %v2648 = vsel %vm1156, %v2535, 0
        %v2651 = vsel %vm1156, %v2536, 0
        %v2654 = vsel %vm1156, %v2537, 0
        %v2657 = vsel %vm1156, %v2538, 0
        %v2660 = vsel %vm1156, %v2539, 0
        %v2663 = vsel %vm1156, %v2540, 0
        %v2666 = vsel %vm1156, %v2541, 0
        %v2669 = vsel %vm1156, %v2542, 0
        %v2672 = vsel %vm1156, %v2543, 0
        %v2675 = vsel %vm1156, %v2544, 0
        %v2678 = vsel %vm1156, %v2545, 0
        %v2681 = vsel %vm1156, %v2546, 0
        %v2684 = vsel %vm1156, %v2547, 0
        %v2687 = vsel %vm1156, %v2548, 0
        %v2690 = vsel %vm1156, %v2549, 0
        %v2693 = vsel %vm1156, %v2550, 0
        %v2696 = vsel %vm1156, %v2551, 0
        %v2699 = vsel %vm1156, %v2552, 0
        %v2702 = vsel %vm1156, %v2553, 0
        %v2705 = vsel %vm1156, %v2554, 0
        %v2708 = vsel %vm1156, %v2555, 0
        %v2711 = vsel %vm1156, %v2556, 0
        %v2714 = vsel %vm1156, %v2557, 0
        %v2717 = vsel %vm1156, %v2558, 0
        %v2720 = vsel %vm1156, %v2559, 0
        %v2723 = vsel %vm1156, %v2560, 0
        %v2726 = vsel %vm1156, %v2561, 0
        %v2729 = vsel %vm1156, %v2562, 0
        %v2732 = vsel %vm1156, %v2563, 0
        %v2735 = vsel %vm1156, %v2564, 0
        %v2738 = vsel %vm1156, %v2565, 0
        %v2741 = vsel %vm1156, %v2566, 0
        %v2744 = vsel %vm1156, %v2567, 0
        %v2747 = vsel %vm1156, %v2568, 0
        %v2750 = vsel %vm1156, %v2569, 0
        %v2753 = vsel %vm1156, %v2570, 0
        %v2756 = vsel %vm1156, %v2571, 0
        %v2759 = vsel %vm1156, %v2572, 0
        %v2762 = vsel %vm1156, %v2573, 0
        %v2765 = vsel %vm1156, %v2574, 0
        %v2768 = vsel %vm1156, %v2575, 0
        %v2771 = vsel %vm1156, %v2576, 0
        %v2774 = vsel %vm1156, %v2577, 0
        %v2777 = vsel %vm1156, %v2578, 0
        %v2780 = vsel %vm1156, %v2579, 0
        %2782 = vmatprep.subr.mxu0 0.0
        %2783 = vmatpush1.xpose.msra.mxu0 %v2591
        %2784 = vmatprep.subr.mxu0 0.0
        %2785 = vmatpush1.xpose.msra.mxu0 %v2594
        %2786 = vmatprep.subr.mxu0 0.0
        %2787 = vmatpush1.xpose.msra.mxu0 %v2597
        %2788 = vmatprep.subr.mxu0 0.0
        %2789 = vmatpush1.xpose.msra.mxu0 %v2600
        %2790 = vmatprep.subr.mxu0 0.0
        %2791 = vmatpush1.xpose.msra.mxu0 %v2603
        %2792 = vmatprep.subr.mxu0 0.0
        %2793 = vmatpush1.xpose.msra.mxu0 %v2606
        %2794 = vmatprep.subr.mxu0 0.0
        %2795 = vmatpush1.xpose.msra.mxu0 %v2609
        %2796 = vmatprep.subr.mxu0 0.0
        %2797 = vmatpush1.xpose.msra.mxu0 %v2612
        %2798 = vmatprep.subr.mxu0 0.0
        %2799 = vmatpush1.xpose.msra.mxu0 %v2615
        %2800 = vmatprep.subr.mxu0 0.0
        %2801 = vmatpush1.xpose.msra.mxu0 %v2618
        %2802 = vmatprep.subr.mxu0 0.0
        %2803 = vmatpush1.xpose.msra.mxu0 %v2621
        %2804 = vmatprep.subr.mxu0 0.0
        %2805 = vmatpush1.xpose.msra.mxu0 %v2624
        %2806 = vmatprep.subr.mxu0 0.0
        %2807 = vmatpush1.xpose.msra.mxu0 %v2627
        %2808 = vmatprep.subr.mxu0 0.0
        %2809 = vmatpush1.xpose.msra.mxu0 %v2630
        %2810 = vmatprep.subr.mxu0 0.0
        %2811 = vmatpush1.xpose.msra.mxu0 %v2633
        %2812 = vmatprep.subr.mxu0 0.0
        %2813 = vmatpush1.xpose.msra.mxu0 %v2636
        %2814 = vmatprep.subr.mxu0 0.0
        %2815 = vmatpush1.xpose.msra.mxu0 %v2639
        %2816 = vmatprep.subr.mxu0 0.0
        %2817 = vmatpush1.xpose.msra.mxu0 %v2642
        %2818 = vmatprep.subr.mxu0 0.0
        %2819 = vmatpush1.xpose.msra.mxu0 %v2645
        %2820 = vmatprep.subr.mxu0 0.0
        %2821 = vmatpush1.xpose.msra.mxu0 %v2648
        %2822 = vmatprep.subr.mxu0 0.0
        %2823 = vmatpush1.xpose.msra.mxu0 %v2651
        %2824 = vmatprep.subr.mxu0 0.0
        %2825 = vmatpush1.xpose.msra.mxu0 %v2654
        %2826 = vmatprep.subr.mxu0 0.0
        %2827 = vmatpush1.xpose.msra.mxu0 %v2657
        %2828 = vmatprep.subr.mxu0 0.0
        %2829 = vmatpush1.xpose.msra.mxu0 %v2660
        %2830 = vmatprep.subr.mxu0 0.0
        %2831 = vmatpush1.xpose.msra.mxu0 %v2663
        %2832 = vmatprep.subr.mxu0 0.0
        %2833 = vmatpush1.xpose.msra.mxu0 %v2666
        %2834 = vmatprep.subr.mxu0 0.0
        %2835 = vmatpush1.xpose.msra.mxu0 %v2669
        %2836 = vmatprep.subr.mxu0 0.0
        %2837 = vmatpush1.xpose.msra.mxu0 %v2672
        %2838 = vmatprep.subr.mxu0 0.0
        %2839 = vmatpush1.xpose.msra.mxu0 %v2675
        %2840 = vmatprep.subr.mxu0 0.0
        %2841 = vmatpush1.xpose.msra.mxu0 %v2678
        %2842 = vmatprep.subr.mxu0 0.0
        %2843 = vmatpush1.xpose.msra.mxu0 %v2681
        %2844 = vmatprep.subr.mxu0 0.0
        %2845 = vmatpush1.xpose.msra.mxu0 %v2684
        %2846 = vmatprep.mubr.f32.mxu0 0.0
        %2847 = vmatmul.mubr.f32.gmra.mrb[0].mxu0 %v2588
        %v2848 = vpop.f32.mrb[0].mxu0
        %v2849 = vadd.f32 %v2585, %v2848
        %v2850 = vpop.f32.mrb[0].mxu0
        %v2851 = vadd.f32 %v2585, %v2850
        %2852 = vdwg.mxu0
        %2853 = vmatprep.subr.mxu0 0.0
        %2854 = vmatpush1.xpose.msra.mxu0 %v2687
        %2855 = vmatprep.subr.mxu0 0.0
        %2856 = vmatpush1.xpose.msra.mxu0 %v2690
        %2857 = vmatprep.subr.mxu0 0.0
        %2858 = vmatpush1.xpose.msra.mxu0 %v2693
        %2859 = vmatprep.subr.mxu0 0.0
        %2860 = vmatpush1.xpose.msra.mxu0 %v2696
        %2861 = vmatprep.subr.mxu0 0.0
        %2862 = vmatpush1.xpose.msra.mxu0 %v2699
        %2863 = vmatprep.subr.mxu0 0.0
        %2864 = vmatpush1.xpose.msra.mxu0 %v2702
        %2865 = vmatprep.subr.mxu0 0.0
        %2866 = vmatpush1.xpose.msra.mxu0 %v2705
        %2867 = vmatprep.subr.mxu0 0.0
        %2868 = vmatpush1.xpose.msra.mxu0 %v2708
        %2869 = vmatprep.subr.mxu0 0.0
        %2870 = vmatpush1.xpose.msra.mxu0 %v2711
        %2871 = vmatprep.subr.mxu0 0.0
        %2872 = vmatpush1.xpose.msra.mxu0 %v2714
        %2873 = vmatprep.subr.mxu0 0.0
        %2874 = vmatpush1.xpose.msra.mxu0 %v2717
        %2875 = vmatprep.subr.mxu0 0.0
        %2876 = vmatpush1.xpose.msra.mxu0 %v2720
        %2877 = vmatprep.subr.mxu0 0.0
        %2878 = vmatpush1.xpose.msra.mxu0 %v2723
        %2879 = vmatprep.subr.mxu0 0.0
        %2880 = vmatpush1.xpose.msra.mxu0 %v2726
        %2881 = vmatprep.subr.mxu0 0.0
        %2882 = vmatpush1.xpose.msra.mxu0 %v2729
        %2883 = vmatprep.subr.mxu0 0.0
        %2884 = vmatpush1.xpose.msra.mxu0 %v2732
        %2885 = vmatprep.subr.mxu0 0.0
        %2886 = vmatpush1.xpose.msra.mxu0 %v2735
        %2887 = vmatprep.subr.mxu0 0.0
        %2888 = vmatpush1.xpose.msra.mxu0 %v2738
        %2889 = vmatprep.subr.mxu0 0.0
        %2890 = vmatpush1.xpose.msra.mxu0 %v2741
        %2891 = vmatprep.subr.mxu0 0.0
        %2892 = vmatpush1.xpose.msra.mxu0 %v2744
        %2893 = vmatprep.subr.mxu0 0.0
        %2894 = vmatpush1.xpose.msra.mxu0 %v2747
        %2895 = vmatprep.subr.mxu0 0.0
        %2896 = vmatpush1.xpose.msra.mxu0 %v2750
        %2897 = vmatprep.subr.mxu0 0.0
        %2898 = vmatpush1.xpose.msra.mxu0 %v2753
        %2899 = vmatprep.subr.mxu0 0.0
        %2900 = vmatpush1.xpose.msra.mxu0 %v2756
        %2901 = vmatprep.subr.mxu0 0.0
        %2902 = vmatpush1.xpose.msra.mxu0 %v2759
        %2903 = vmatprep.subr.mxu0 0.0
        %2904 = vmatpush1.xpose.msra.mxu0 %v2762
        %2905 = vmatprep.subr.mxu0 0.0
        %2906 = vmatpush1.xpose.msra.mxu0 %v2765
        %2907 = vmatprep.subr.mxu0 0.0
        %2908 = vmatpush1.xpose.msra.mxu0 %v2768
        %2909 = vmatprep.subr.mxu0 0.0
        %2910 = vmatpush1.xpose.msra.mxu0 %v2771
        %2911 = vmatprep.subr.mxu0 0.0
        %2912 = vmatpush1.xpose.msra.mxu0 %v2774
        %2913 = vmatprep.subr.mxu0 0.0
        %2914 = vmatpush1.xpose.msra.mxu0 %v2777
        %2915 = vmatprep.subr.mxu0 0.0
        %2916 = vmatpush1.xpose.msra.mxu0 %v2780
        %2917 = vmatprep.mubr.f32.mxu0 0.0
        %2918 = vmatmul.mubr.f32.gmra.mrb[0].mxu0 %v2588
        %v2919 = vpop.f32.mrb[0].mxu0
        %v2920 = vadd.f32 %v2585, %v2919
        %v2921 = vpop.f32.mrb[0].mxu0
        %v2922 = vadd.f32 %v2585, %v2921
        %2923 = vdwg.mxu0
        %2924 = vst [vmem:[%s394] sm:$0x3f] %v2849
        %2925 = vst [vmem:[%s394 + $0x8] sm:$0x3f] %v2851
        %2926 = vst [vmem:[%s394 + $0x10] sm:$0x3f] %v2920
        %2927 = vst [vmem:[%s394 + $0x18] sm:$0x3f] %v2922
        %s2928 = sand.u32 %s235, 1
        %s2929 = scalar_lea.sflag [#allocation3], %s2928
        %s2930 = sand.u32 %s235, 1
        %s2931 = smul.addr %s2930, 32
        %s2932 = scalar_lea.vmem [#allocation2], %s2931
        // Predicated region
        $region57: #{tpu_custom_call.1} parent=55 // pred_check
          %p2933 = pneg %p245
        $region58: #{tpu_custom_call.1} parent=55 // pred_check_branch
          %2935 = sbr.rel (%p2933) target = $region60
        $region59: #{tpu_custom_call.1} parent=55 // pred_region
          %s2936 = smul.u32 4, %s23
          %s2938 = ssub.s32 512, 512
          %2939 = vsyncadd %s2929, %s2938
          %s2940 = smul.addr %s2936, 128
          %s2941 = scalar_lea.hbm %s9, %s2940
          %s2943 = sshll.u32 %s2932, 4
          %s2944 = int_to_ptr.vmem [resolvable:$true] %s2943
          %2946 = dma.vmem_to_hbm [thread:$0]  %s2944, 512, %s2941, %s2929
        $region60: #{tpu_custom_call.1} parent=55 // pred_fallthru
          _
      $region56: #{tpu_custom_call.1} parent=5 // pred_fallthru
        _
      %p2947 = scmp.le.s32.totalorder 2, %s18
      // Predicated region
      $region61: #{tpu_custom_call.1} parent=5 // pred_check
        %p2948 = pneg %p2947
      $region62: #{tpu_custom_call.1} parent=5 // pred_check_branch
        %2950 = sbr.rel (%p2948) target = $region64
      $region63: #{tpu_custom_call.1} parent=5 // pred_region
        %s2951 = ssub.s32 %s18, 2
        // Predicated region
        $region65: #{tpu_custom_call.1} parent=63 // pred_check
          %p2952 = pneg %p251
        $region66: #{tpu_custom_call.1} parent=63 // pred_check_branch
          %2954 = sbr.rel (%p2952) target = $region68
        $region67: #{tpu_custom_call.1} parent=63 // pred_region
          %s2955 = sand.u32 %s236, 1
          %s2956 = scalar_lea.sflag [#allocation3], %s2955
          %s2957 = sand.u32 %s236, 1
          %s2958 = smul.addr %s2957, 32
          %s2959 = scalar_lea.vmem [#allocation2], %s2958
          %2960 = dma.done %s2956, 512
        $region68: #{tpu_custom_call.1} parent=63 // pred_fallthru
          _
      $region64: #{tpu_custom_call.1} parent=5 // pred_fallthru
        _
    $region6: #{tpu_custom_call.1} parent=1 // loop_footer
      %s22 = sadd.s32 1, %s18
    $region7: #{tpu_custom_call.1} parent=1 // loop_footer_branch
      %17 = sbr.rel target = $region3
    $region8: #{tpu_custom_call.1} parent=1 // loop_exit
      _
    %2961 = vsyncpa [#allocation3], 1
    %s2962 = scalar_lea.sflag [#allocation3], 1
    %2963 = vsyncpa %s2962, 1

</llo_original>
